<compile_context>
chip_gen: v7x
topology: tpu7x:2x2x1
jax: 0.10.0
libtpu: 0.0.40
codegen_flags: <defaults>
</compile_context>

<pallas_src>
import functools

import jax
import jax.numpy as jnp
from jax import lax
from jax.experimental import pallas as pl
from jax.experimental.pallas import tpu as pltpu

EPS = 1e-5


def _make_kernel(taps, p_out, inv_count):
    """taps: list of (weight_tap_index, parity_slab_index, flat_start_offset)."""

    def kernel(slab_ref, w_ref, b_ref, mask_ref, o_ref):
        # slab_ref: (1, 4, S_pad, Cin)   bf16 parity-split, flattened, zero-padded input
        # w_ref:    (KH*KW, Ct, Cin)     bf16 per-tap weights
        # b_ref:    (Ct, 1)              f32 bias
        # mask_ref: (1, P_out)           f32, 1.0 at valid output positions
        # o_ref:    (1, Ct, P_out)       f32 output block (also the conv accumulator)
        for n_t, (t, par, start) in enumerate(taps):
            x_tap = slab_ref[0, par, start:start + p_out, :]          # (P_out, Cin)
            w_tap = w_ref[t]                                          # (Ct, Cin)
            contrib = lax.dot_general(                                # (Ct, P_out) on MXU
                w_tap, x_tap,
                dimension_numbers=(((1,), (1,)), ((), ())),
                preferred_element_type=jnp.float32)
            if n_t == 0:
                o_ref[0] = contrib
            else:
                o_ref[0] += contrib

        y = o_ref[0] + b_ref[...]                                     # conv + bias (f32)
        m = mask_ref[...]                                             # (1, P_out)
        # Single-pass masked instance-norm statistics over the spatial (lane) axis.
        s1 = jnp.sum(y * m, axis=1, keepdims=True)                    # (Ct, 1)
        s2 = jnp.sum(y * y * m, axis=1, keepdims=True)                # (Ct, 1)
        mean = s1 * inv_count
        var = jnp.maximum(s2 * inv_count - mean * mean, 0.0)
        y_n = (y - mean) * lax.rsqrt(var + EPS)
        o_ref[0] = jnp.maximum(y_n, 0.0)                              # ReLU

    return kernel


@functools.partial(jax.jit, static_argnames=("stride", "pad"))
def contracting_block_gen(x_nchw, weight, bias, *, stride=2, pad=1):
    """x_nchw: (N, Cin, H, W); weight: (Cout, Cin, KH, KW); bias: (Cout,)."""
    n, cin, h, w = x_nchw.shape
    cout, cin_w, kh, kw = weight.shape
    assert cin_w == cin
    assert stride == 2, "kernel specialised to the stride-2 CycleGAN contracting conv"
    hp, wp = h + 2 * pad, w + 2 * pad
    assert hp % 2 == 0 and wp % 2 == 0
    ho = (hp - kh) // 2 + 1
    wo = (wp - kw) // 2 + 1
    hh, wh = hp // 2, wp // 2                 # per-parity slab extents
    assert kh // 2 + ho <= hh and kw // 2 + wo <= wh

    p_out = ho * wh                           # flattened output rows (1 garbage col/row)
    s_pad = (hh + 1) * wh                     # slab flat length (so every tap slice fits)

    # Taps: tap (ki, kj) -> parity slab (ki%2, kj%2), flat start (ki//2)*wh + kj//2.
    taps = []
    for ki in range(kh):
        for kj in range(kw):
            par = (ki % 2) * 2 + (kj % 2)
            start = (ki // 2) * wh + (kj // 2)
            assert start + p_out <= s_pad
            taps.append((ki * kw + kj, par, start))

    # ---- input: NCHW -> reflect-padded NHWC (bf16) -> 2x2 parity slabs, flattened ----
    xt = jnp.transpose(x_nchw, (0, 2, 3, 1)).astype(jnp.bfloat16)
    xp = jnp.pad(xt, ((0, 0), (pad, pad), (pad, pad), (0, 0)), mode="reflect")
    slabs = xp.reshape(n, hh, 2, wh, 2, cin)
    slabs = jnp.transpose(slabs, (0, 2, 4, 1, 3, 5))                  # (n, 2, 2, hh, wh, cin)
    slabs = slabs.reshape(n, 4, hh * wh, cin)
    slabs = jnp.pad(slabs, ((0, 0), (0, 0), (0, s_pad - hh * wh), (0, 0)))

    # ---- weights / bias / validity mask ----
    w_all = jnp.transpose(weight, (2, 3, 0, 1)).reshape(kh * kw, cout, cin)
    w_all = w_all.astype(jnp.bfloat16)
    b_col = bias.reshape(cout, 1).astype(jnp.float32)
    mask = (jnp.arange(p_out) % wh < wo).astype(jnp.float32).reshape(1, p_out)

    # Channel tiling: multiples of 128 lanes-worth of output channels when large.
    c_tile = 128 if (cout > 128 and cout % 128 == 0) else cout

    kernel = _make_kernel(taps, p_out, 1.0 / float(ho * wo))
    out = pl.pallas_call(
        kernel,
        out_shape=jax.ShapeDtypeStruct((n, cout, p_out), jnp.float32),
        grid_spec=pltpu.PrefetchScalarGridSpec(
            num_scalar_prefetch=0,
            grid=(n, cout // c_tile),
            in_specs=[
                pl.BlockSpec((1, 4, s_pad, cin), lambda i, c: (i, 0, 0, 0)),
                pl.BlockSpec((kh * kw, c_tile, cin), lambda i, c: (0, c, 0)),
                pl.BlockSpec((c_tile, 1), lambda i, c: (c, 0)),
                pl.BlockSpec((1, p_out), lambda i, c: (0, 0)),
            ],
            out_specs=pl.BlockSpec((1, c_tile, p_out), lambda i, c: (i, c, 0)),
        ),
        compiler_params=pltpu.CompilerParams(
            dimension_semantics=("parallel", "parallel"),
            vmem_limit_bytes=64 * 1024 * 1024,
        ),
    )(slabs, w_all, b_col, mask)

    # (N, Cout, Ho*Wh) -> drop the per-row garbage column -> NCHW, no transpose needed.
    out = out.reshape(n, cout, ho, wh)[:, :, :, :wo]
    return out


def _reference(x_nchw, weight, bias, *, stride=2, pad=1):
    """Pure-JAX reference (f32, exact conv) for validation."""
    xp = jnp.pad(x_nchw, ((0, 0), (0, 0), (pad, pad), (pad, pad)), mode="reflect")
    y = lax.conv_general_dilated(
        xp, weight, window_strides=(stride, stride), padding="VALID",
        dimension_numbers=("NCHW", "OIHW", "NCHW"),
        precision=lax.Precision.HIGHEST)
    y = y + bias.reshape(1, -1, 1, 1)
    mean = jnp.mean(y, axis=(2, 3), keepdims=True)
    var = jnp.mean((y - mean) ** 2, axis=(2, 3), keepdims=True)
    return jnp.maximum((y - mean) / jnp.sqrt(var + EPS), 0.0)


if __name__ == "__main__":
    key = jax.random.PRNGKey(0)
    k_x, k_w, k_b = jax.random.split(key, 3)
    N, CIN, COUT, H, W, KS = 2, 4, 8, 16, 16, 3

    x = jax.random.normal(k_x, (N, CIN, H, W), dtype=jnp.float32)
    weight = jax.random.normal(k_w, (COUT, CIN, KS, KS), dtype=jnp.float32) * 0.1
    bias = jax.random.normal(k_b, (COUT,), dtype=jnp.float32) * 0.1

    out = contracting_block_gen(x, weight, bias, stride=2, pad=1)
    out = jax.block_until_ready(out)
    assert out.shape == (N, COUT, H // 2, W // 2), out.shape

    # Tight like-for-like check: the kernel feeds bf16 x/weights to the MXU, so
    # compare against an f32 reference driven by the same bf16-rounded inputs.
    x_q = x.astype(jnp.bfloat16).astype(jnp.float32)
    w_q = weight.astype(jnp.bfloat16).astype(jnp.float32)
    ref_q = _reference(x_q, w_q, bias, stride=2, pad=1)
    err_q = float(jnp.max(jnp.abs(out - ref_q)))
    assert jnp.allclose(out, ref_q, atol=2e-3, rtol=2e-3), err_q

    # Loose sanity check against the full-precision reference.
    ref = _reference(x, weight, bias, stride=2, pad=1)
    err = float(jnp.max(jnp.abs(out - ref)))
    assert jnp.allclose(out, ref, atol=5e-2, rtol=5e-2), err

    print("KERNEL_OK")
</pallas_src>

<mosaic_0001>
module attributes {stable_mosaic.version = 11 : i64} {
  func.func @kernel(%arg0: i32, %arg1: i32, %arg2: memref<1x4x90x4xbf16, #tpu.memory_space<vmem>>, %arg3: memref<9x8x4xbf16, #tpu.memory_space<vmem>>, %arg4: memref<8x1xf32, #tpu.memory_space<vmem>>, %arg5: memref<1x72xf32, #tpu.memory_space<vmem>>, %arg6: memref<1x8x72xf32, #tpu.memory_space<vmem>>) attributes {dimension_semantics = [#tpu.dimension_semantics<parallel>, #tpu.dimension_semantics<parallel>], iteration_bounds = array<i64: 2, 1>, scalar_prefetch = 0 : i64, scratch_operands = 0 : i64, tpu.core_type = #tpu.core_type<tc>, window_params = [{transform_indices = @transform_0, window_bounds = array<i64: 1, 4, 90, 4>}, {transform_indices = @transform_1, window_bounds = array<i64: 9, 8, 4>}, {transform_indices = @transform_2, window_bounds = array<i64: 8, 1>}, {pipeline_mode = #tpu.pipeline_mode<synchronous>, transform_indices = @transform_3, window_bounds = array<i64: 1, 72>}, {transform_indices = @transform_4, window_bounds = array<i64: 1, 8, 72>}]} {
    %c0 = arith.constant 0 : index
    %c0_0 = arith.constant 0 : index
    %c0_1 = arith.constant 0 : index
    %c0_2 = arith.constant 0 : index
    %0 = vector.load %arg2[%c0, %c0_0, %c0_1, %c0_2] : memref<1x4x90x4xbf16, #tpu.memory_space<vmem>>, vector<1x1x72x4xbf16>
    %1 = vector.shape_cast %0 : vector<1x1x72x4xbf16> to vector<72x4xbf16>
    %c0_3 = arith.constant 0 : index
    %c0_4 = arith.constant 0 : index
    %c0_5 = arith.constant 0 : index
    %2 = vector.load %arg3[%c0_3, %c0_4, %c0_5] : memref<9x8x4xbf16, #tpu.memory_space<vmem>>, vector<1x8x4xbf16>
    %3 = vector.shape_cast %2 : vector<1x8x4xbf16> to vector<8x4xbf16>
    %cst = arith.constant dense<0.000000e+00> : vector<8x72xf32>
    %4 = tpu.matmul %3, %1, %cst {dimension_numbers = #tpu.dot_dimension_numbers<[1], [1], [0], [0], [0, 0, 1, 0], [], []>} : vector<8x4xbf16>, vector<72x4xbf16>, vector<8x72xf32> -> vector<8x72xf32>
    %c0_6 = arith.constant 0 : index
    %c0_7 = arith.constant 0 : index
    %c0_8 = arith.constant 0 : index
    %5 = vector.load %arg6[%c0_6, %c0_7, %c0_8] : memref<1x8x72xf32, #tpu.memory_space<vmem>>, vector<1x8x72xf32>
    %6 = vector.shape_cast %5 : vector<1x8x72xf32> to vector<8x72xf32>
    %7 = vector.shape_cast %4 : vector<8x72xf32> to vector<1x8x72xf32>
    tpu.vector_store %arg6[%c0_6, %c0_7, %c0_8], %7 {strides = array<i32>} : memref<1x8x72xf32, #tpu.memory_space<vmem>>, vector<1x8x72xf32>,
    %c0_9 = arith.constant 0 : index
    %c1 = arith.constant 1 : index
    %c0_10 = arith.constant 0 : index
    %c0_11 = arith.constant 0 : index
    %8 = vector.load %arg2[%c0_9, %c1, %c0_10, %c0_11] : memref<1x4x90x4xbf16, #tpu.memory_space<vmem>>, vector<1x1x72x4xbf16>
    %9 = vector.shape_cast %8 : vector<1x1x72x4xbf16> to vector<72x4xbf16>
    %c1_12 = arith.constant 1 : index
    %c0_13 = arith.constant 0 : index
    %c0_14 = arith.constant 0 : index
    %10 = vector.load %arg3[%c1_12, %c0_13, %c0_14] : memref<9x8x4xbf16, #tpu.memory_space<vmem>>, vector<1x8x4xbf16>
    %11 = vector.shape_cast %10 : vector<1x8x4xbf16> to vector<8x4xbf16>
    %cst_15 = arith.constant dense<0.000000e+00> : vector<8x72xf32>
    %12 = tpu.matmul %11, %9, %cst_15 {dimension_numbers = #tpu.dot_dimension_numbers<[1], [1], [0], [0], [0, 0, 1, 0], [], []>} : vector<8x4xbf16>, vector<72x4xbf16>, vector<8x72xf32> -> vector<8x72xf32>
    %c0_16 = arith.constant 0 : index
    %c0_17 = arith.constant 0 : index
    %c0_18 = arith.constant 0 : index
    %13 = vector.load %arg6[%c0_16, %c0_17, %c0_18] : memref<1x8x72xf32, #tpu.memory_space<vmem>>, vector<1x8x72xf32>
    %14 = vector.shape_cast %13 : vector<1x8x72xf32> to vector<8x72xf32>
    %15 = arith.addf %14, %12 : vector<8x72xf32>
    %c0_19 = arith.constant 0 : index
    %c0_20 = arith.constant 0 : index
    %c0_21 = arith.constant 0 : index
    %16 = vector.load %arg6[%c0_19, %c0_20, %c0_21] : memref<1x8x72xf32, #tpu.memory_space<vmem>>, vector<1x8x72xf32>
    %17 = vector.shape_cast %16 : vector<1x8x72xf32> to vector<8x72xf32>
    %18 = vector.shape_cast %15 : vector<8x72xf32> to vector<1x8x72xf32>
    tpu.vector_store %arg6[%c0_19, %c0_20, %c0_21], %18 {strides = array<i32>} : memref<1x8x72xf32, #tpu.memory_space<vmem>>, vector<1x8x72xf32>,
    %c0_22 = arith.constant 0 : index
    %c0_23 = arith.constant 0 : index
    %c1_24 = arith.constant 1 : index
    %c0_25 = arith.constant 0 : index
    %19 = vector.load %arg2[%c0_22, %c0_23, %c1_24, %c0_25] : memref<1x4x90x4xbf16, #tpu.memory_space<vmem>>, vector<1x1x72x4xbf16>
    %20 = vector.shape_cast %19 : vector<1x1x72x4xbf16> to vector<72x4xbf16>
    %c2 = arith.constant 2 : index
    %c0_26 = arith.constant 0 : index
    %c0_27 = arith.constant 0 : index
    %21 = vector.load %arg3[%c2, %c0_26, %c0_27] : memref<9x8x4xbf16, #tpu.memory_space<vmem>>, vector<1x8x4xbf16>
    %22 = vector.shape_cast %21 : vector<1x8x4xbf16> to vector<8x4xbf16>
    %cst_28 = arith.constant dense<0.000000e+00> : vector<8x72xf32>
    %23 = tpu.matmul %22, %20, %cst_28 {dimension_numbers = #tpu.dot_dimension_numbers<[1], [1], [0], [0], [0, 0, 1, 0], [], []>} : vector<8x4xbf16>, vector<72x4xbf16>, vector<8x72xf32> -> vector<8x72xf32>
    %c0_29 = arith.constant 0 : index
    %c0_30 = arith.constant 0 : index
    %c0_31 = arith.constant 0 : index
    %24 = vector.load %arg6[%c0_29, %c0_30, %c0_31] : memref<1x8x72xf32, #tpu.memory_space<vmem>>, vector<1x8x72xf32>
    %25 = vector.shape_cast %24 : vector<1x8x72xf32> to vector<8x72xf32>
    %26 = arith.addf %25, %23 : vector<8x72xf32>
    %c0_32 = arith.constant 0 : index
    %c0_33 = arith.constant 0 : index
    %c0_34 = arith.constant 0 : index
    %27 = vector.load %arg6[%c0_32, %c0_33, %c0_34] : memref<1x8x72xf32, #tpu.memory_space<vmem>>, vector<1x8x72xf32>
    %28 = vector.shape_cast %27 : vector<1x8x72xf32> to vector<8x72xf32>
    %29 = vector.shape_cast %26 : vector<8x72xf32> to vector<1x8x72xf32>
    tpu.vector_store %arg6[%c0_32, %c0_33, %c0_34], %29 {strides = array<i32>} : memref<1x8x72xf32, #tpu.memory_space<vmem>>, vector<1x8x72xf32>,
    %c0_35 = arith.constant 0 : index
    %c2_36 = arith.constant 2 : index
    %c0_37 = arith.constant 0 : index
    %c0_38 = arith.constant 0 : index
    %30 = vector.load %arg2[%c0_35, %c2_36, %c0_37, %c0_38] : memref<1x4x90x4xbf16, #tpu.memory_space<vmem>>, vector<1x1x72x4xbf16>
    %31 = vector.shape_cast %30 : vector<1x1x72x4xbf16> to vector<72x4xbf16>
    %c3 = arith.constant 3 : index
    %c0_39 = arith.constant 0 : index
    %c0_40 = arith.constant 0 : index
    %32 = vector.load %arg3[%c3, %c0_39, %c0_40] : memref<9x8x4xbf16, #tpu.memory_space<vmem>>, vector<1x8x4xbf16>
    %33 = vector.shape_cast %32 : vector<1x8x4xbf16> to vector<8x4xbf16>
    %cst_41 = arith.constant dense<0.000000e+00> : vector<8x72xf32>
    %34 = tpu.matmul %33, %31, %cst_41 {dimension_numbers = #tpu.dot_dimension_numbers<[1], [1], [0], [0], [0, 0, 1, 0], [], []>} : vector<8x4xbf16>, vector<72x4xbf16>, vector<8x72xf32> -> vector<8x72xf32>
    %c0_42 = arith.constant 0 : index
    %c0_43 = arith.constant 0 : index
    %c0_44 = arith.constant 0 : index
    %35 = vector.load %arg6[%c0_42, %c0_43, %c0_44] : memref<1x8x72xf32, #tpu.memory_space<vmem>>, vector<1x8x72xf32>
    %36 = vector.shape_cast %35 : vector<1x8x72xf32> to vector<8x72xf32>
    %37 = arith.addf %36, %34 : vector<8x72xf32>
    %c0_45 = arith.constant 0 : index
    %c0_46 = arith.constant 0 : index
    %c0_47 = arith.constant 0 : index
    %38 = vector.load %arg6[%c0_45, %c0_46, %c0_47] : memref<1x8x72xf32, #tpu.memory_space<vmem>>, vector<1x8x72xf32>
    %39 = vector.shape_cast %38 : vector<1x8x72xf32> to vector<8x72xf32>
    %40 = vector.shape_cast %37 : vector<8x72xf32> to vector<1x8x72xf32>
    tpu.vector_store %arg6[%c0_45, %c0_46, %c0_47], %40 {strides = array<i32>} : memref<1x8x72xf32, #tpu.memory_space<vmem>>, vector<1x8x72xf32>,
    %c0_48 = arith.constant 0 : index
    %c3_49 = arith.constant 3 : index
    %c0_50 = arith.constant 0 : index
    %c0_51 = arith.constant 0 : index
    %41 = vector.load %arg2[%c0_48, %c3_49, %c0_50, %c0_51] : memref<1x4x90x4xbf16, #tpu.memory_space<vmem>>, vector<1x1x72x4xbf16>
    %42 = vector.shape_cast %41 : vector<1x1x72x4xbf16> to vector<72x4xbf16>
    %c4 = arith.constant 4 : index
    %c0_52 = arith.constant 0 : index
    %c0_53 = arith.constant 0 : index
    %43 = vector.load %arg3[%c4, %c0_52, %c0_53] : memref<9x8x4xbf16, #tpu.memory_space<vmem>>, vector<1x8x4xbf16>
    %44 = vector.shape_cast %43 : vector<1x8x4xbf16> to vector<8x4xbf16>
    %cst_54 = arith.constant dense<0.000000e+00> : vector<8x72xf32>
    %45 = tpu.matmul %44, %42, %cst_54 {dimension_numbers = #tpu.dot_dimension_numbers<[1], [1], [0], [0], [0, 0, 1, 0], [], []>} : vector<8x4xbf16>, vector<72x4xbf16>, vector<8x72xf32> -> vector<8x72xf32>
    %c0_55 = arith.constant 0 : index
    %c0_56 = arith.constant 0 : index
    %c0_57 = arith.constant 0 : index
    %46 = vector.load %arg6[%c0_55, %c0_56, %c0_57] : memref<1x8x72xf32, #tpu.memory_space<vmem>>, vector<1x8x72xf32>
    %47 = vector.shape_cast %46 : vector<1x8x72xf32> to vector<8x72xf32>
    %48 = arith.addf %47, %45 : vector<8x72xf32>
    %c0_58 = arith.constant 0 : index
    %c0_59 = arith.constant 0 : index
    %c0_60 = arith.constant 0 : index
    %49 = vector.load %arg6[%c0_58, %c0_59, %c0_60] : memref<1x8x72xf32, #tpu.memory_space<vmem>>, vector<1x8x72xf32>
    %50 = vector.shape_cast %49 : vector<1x8x72xf32> to vector<8x72xf32>
    %51 = vector.shape_cast %48 : vector<8x72xf32> to vector<1x8x72xf32>
    tpu.vector_store %arg6[%c0_58, %c0_59, %c0_60], %51 {strides = array<i32>} : memref<1x8x72xf32, #tpu.memory_space<vmem>>, vector<1x8x72xf32>,
    %c0_61 = arith.constant 0 : index
    %c2_62 = arith.constant 2 : index
    %c1_63 = arith.constant 1 : index
    %c0_64 = arith.constant 0 : index
    %52 = vector.load %arg2[%c0_61, %c2_62, %c1_63, %c0_64] : memref<1x4x90x4xbf16, #tpu.memory_space<vmem>>, vector<1x1x72x4xbf16>
    %53 = vector.shape_cast %52 : vector<1x1x72x4xbf16> to vector<72x4xbf16>
    %c5 = arith.constant 5 : index
    %c0_65 = arith.constant 0 : index
    %c0_66 = arith.constant 0 : index
    %54 = vector.load %arg3[%c5, %c0_65, %c0_66] : memref<9x8x4xbf16, #tpu.memory_space<vmem>>, vector<1x8x4xbf16>
    %55 = vector.shape_cast %54 : vector<1x8x4xbf16> to vector<8x4xbf16>
    %cst_67 = arith.constant dense<0.000000e+00> : vector<8x72xf32>
    %56 = tpu.matmul %55, %53, %cst_67 {dimension_numbers = #tpu.dot_dimension_numbers<[1], [1], [0], [0], [0, 0, 1, 0], [], []>} : vector<8x4xbf16>, vector<72x4xbf16>, vector<8x72xf32> -> vector<8x72xf32>
    %c0_68 = arith.constant 0 : index
    %c0_69 = arith.constant 0 : index
    %c0_70 = arith.constant 0 : index
    %57 = vector.load %arg6[%c0_68, %c0_69, %c0_70] : memref<1x8x72xf32, #tpu.memory_space<vmem>>, vector<1x8x72xf32>
    %58 = vector.shape_cast %57 : vector<1x8x72xf32> to vector<8x72xf32>
    %59 = arith.addf %58, %56 : vector<8x72xf32>
    %c0_71 = arith.constant 0 : index
    %c0_72 = arith.constant 0 : index
    %c0_73 = arith.constant 0 : index
    %60 = vector.load %arg6[%c0_71, %c0_72, %c0_73] : memref<1x8x72xf32, #tpu.memory_space<vmem>>, vector<1x8x72xf32>
    %61 = vector.shape_cast %60 : vector<1x8x72xf32> to vector<8x72xf32>
    %62 = vector.shape_cast %59 : vector<8x72xf32> to vector<1x8x72xf32>
    tpu.vector_store %arg6[%c0_71, %c0_72, %c0_73], %62 {strides = array<i32>} : memref<1x8x72xf32, #tpu.memory_space<vmem>>, vector<1x8x72xf32>,
    %c0_74 = arith.constant 0 : index
    %c0_75 = arith.constant 0 : index
    %c9 = arith.constant 9 : index
    %c0_76 = arith.constant 0 : index
    %63 = vector.load %arg2[%c0_74, %c0_75, %c9, %c0_76] : memref<1x4x90x4xbf16, #tpu.memory_space<vmem>>, vector<1x1x72x4xbf16>
    %64 = vector.shape_cast %63 : vector<1x1x72x4xbf16> to vector<72x4xbf16>
    %c6 = arith.constant 6 : index
    %c0_77 = arith.constant 0 : index
    %c0_78 = arith.constant 0 : index
    %65 = vector.load %arg3[%c6, %c0_77, %c0_78] : memref<9x8x4xbf16, #tpu.memory_space<vmem>>, vector<1x8x4xbf16>
    %66 = vector.shape_cast %65 : vector<1x8x4xbf16> to vector<8x4xbf16>
    %cst_79 = arith.constant dense<0.000000e+00> : vector<8x72xf32>
    %67 = tpu.matmul %66, %64, %cst_79 {dimension_numbers = #tpu.dot_dimension_numbers<[1], [1], [0], [0], [0, 0, 1, 0], [], []>} : vector<8x4xbf16>, vector<72x4xbf16>, vector<8x72xf32> -> vector<8x72xf32>
    %c0_80 = arith.constant 0 : index
    %c0_81 = arith.constant 0 : index
    %c0_82 = arith.constant 0 : index
    %68 = vector.load %arg6[%c0_80, %c0_81, %c0_82] : memref<1x8x72xf32, #tpu.memory_space<vmem>>, vector<1x8x72xf32>
    %69 = vector.shape_cast %68 : vector<1x8x72xf32> to vector<8x72xf32>
    %70 = arith.addf %69, %67 : vector<8x72xf32>
    %c0_83 = arith.constant 0 : index
    %c0_84 = arith.constant 0 : index
    %c0_85 = arith.constant 0 : index
    %71 = vector.load %arg6[%c0_83, %c0_84, %c0_85] : memref<1x8x72xf32, #tpu.memory_space<vmem>>, vector<1x8x72xf32>
    %72 = vector.shape_cast %71 : vector<1x8x72xf32> to vector<8x72xf32>
    %73 = vector.shape_cast %70 : vector<8x72xf32> to vector<1x8x72xf32>
    tpu.vector_store %arg6[%c0_83, %c0_84, %c0_85], %73 {strides = array<i32>} : memref<1x8x72xf32, #tpu.memory_space<vmem>>, vector<1x8x72xf32>,
    %c0_86 = arith.constant 0 : index
    %c1_87 = arith.constant 1 : index
    %c9_88 = arith.constant 9 : index
    %c0_89 = arith.constant 0 : index
    %74 = vector.load %arg2[%c0_86, %c1_87, %c9_88, %c0_89] : memref<1x4x90x4xbf16, #tpu.memory_space<vmem>>, vector<1x1x72x4xbf16>
    %75 = vector.shape_cast %74 : vector<1x1x72x4xbf16> to vector<72x4xbf16>
    %c7 = arith.constant 7 : index
    %c0_90 = arith.constant 0 : index
    %c0_91 = arith.constant 0 : index
    %76 = vector.load %arg3[%c7, %c0_90, %c0_91] : memref<9x8x4xbf16, #tpu.memory_space<vmem>>, vector<1x8x4xbf16>
    %77 = vector.shape_cast %76 : vector<1x8x4xbf16> to vector<8x4xbf16>
    %cst_92 = arith.constant dense<0.000000e+00> : vector<8x72xf32>
    %78 = tpu.matmul %77, %75, %cst_92 {dimension_numbers = #tpu.dot_dimension_numbers<[1], [1], [0], [0], [0, 0, 1, 0], [], []>} : vector<8x4xbf16>, vector<72x4xbf16>, vector<8x72xf32> -> vector<8x72xf32>
    %c0_93 = arith.constant 0 : index
    %c0_94 = arith.constant 0 : index
    %c0_95 = arith.constant 0 : index
    %79 = vector.load %arg6[%c0_93, %c0_94, %c0_95] : memref<1x8x72xf32, #tpu.memory_space<vmem>>, vector<1x8x72xf32>
    %80 = vector.shape_cast %79 : vector<1x8x72xf32> to vector<8x72xf32>
    %81 = arith.addf %80, %78 : vector<8x72xf32>
    %c0_96 = arith.constant 0 : index
    %c0_97 = arith.constant 0 : index
    %c0_98 = arith.constant 0 : index
    %82 = vector.load %arg6[%c0_96, %c0_97, %c0_98] : memref<1x8x72xf32, #tpu.memory_space<vmem>>, vector<1x8x72xf32>
    %83 = vector.shape_cast %82 : vector<1x8x72xf32> to vector<8x72xf32>
    %84 = vector.shape_cast %81 : vector<8x72xf32> to vector<1x8x72xf32>
    tpu.vector_store %arg6[%c0_96, %c0_97, %c0_98], %84 {strides = array<i32>} : memref<1x8x72xf32, #tpu.memory_space<vmem>>, vector<1x8x72xf32>,
    %c0_99 = arith.constant 0 : index
    %c0_100 = arith.constant 0 : index
    %c10 = arith.constant 10 : index
    %c0_101 = arith.constant 0 : index
    %85 = vector.load %arg2[%c0_99, %c0_100, %c10, %c0_101] : memref<1x4x90x4xbf16, #tpu.memory_space<vmem>>, vector<1x1x72x4xbf16>
    %86 = vector.shape_cast %85 : vector<1x1x72x4xbf16> to vector<72x4xbf16>
    %c8 = arith.constant 8 : index
    %c0_102 = arith.constant 0 : index
    %c0_103 = arith.constant 0 : index
    %87 = vector.load %arg3[%c8, %c0_102, %c0_103] : memref<9x8x4xbf16, #tpu.memory_space<vmem>>, vector<1x8x4xbf16>
    %88 = vector.shape_cast %87 : vector<1x8x4xbf16> to vector<8x4xbf16>
    %cst_104 = arith.constant dense<0.000000e+00> : vector<8x72xf32>
    %89 = tpu.matmul %88, %86, %cst_104 {dimension_numbers = #tpu.dot_dimension_numbers<[1], [1], [0], [0], [0, 0, 1, 0], [], []>} : vector<8x4xbf16>, vector<72x4xbf16>, vector<8x72xf32> -> vector<8x72xf32>
    %c0_105 = arith.constant 0 : index
    %c0_106 = arith.constant 0 : index
    %c0_107 = arith.constant 0 : index
    %90 = vector.load %arg6[%c0_105, %c0_106, %c0_107] : memref<1x8x72xf32, #tpu.memory_space<vmem>>, vector<1x8x72xf32>
    %91 = vector.shape_cast %90 : vector<1x8x72xf32> to vector<8x72xf32>
    %92 = arith.addf %91, %89 : vector<8x72xf32>
    %c0_108 = arith.constant 0 : index
    %c0_109 = arith.constant 0 : index
    %c0_110 = arith.constant 0 : index
    %93 = vector.load %arg6[%c0_108, %c0_109, %c0_110] : memref<1x8x72xf32, #tpu.memory_space<vmem>>, vector<1x8x72xf32>
    %94 = vector.shape_cast %93 : vector<1x8x72xf32> to vector<8x72xf32>
    %95 = vector.shape_cast %92 : vector<8x72xf32> to vector<1x8x72xf32>
    tpu.vector_store %arg6[%c0_108, %c0_109, %c0_110], %95 {strides = array<i32>} : memref<1x8x72xf32, #tpu.memory_space<vmem>>, vector<1x8x72xf32>,
    %c0_111 = arith.constant 0 : index
    %c0_112 = arith.constant 0 : index
    %c0_113 = arith.constant 0 : index
    %96 = vector.load %arg6[%c0_111, %c0_112, %c0_113] : memref<1x8x72xf32, #tpu.memory_space<vmem>>, vector<1x8x72xf32>
    %97 = vector.shape_cast %96 : vector<1x8x72xf32> to vector<8x72xf32>
    %c0_114 = arith.constant 0 : index
    %c0_115 = arith.constant 0 : index
    %98 = vector.load %arg4[%c0_114, %c0_115] : memref<8x1xf32, #tpu.memory_space<vmem>>, vector<8x1xf32>
    %99 = vector.broadcast %98 : vector<8x1xf32> to vector<8x72xf32>
    %100 = arith.addf %97, %99 : vector<8x72xf32>
    %c0_116 = arith.constant 0 : index
    %c0_117 = arith.constant 0 : index
    %101 = vector.load %arg5[%c0_116, %c0_117] : memref<1x72xf32, #tpu.memory_space<vmem>>, vector<1x72xf32>
    %102 = vector.broadcast %101 : vector<1x72xf32> to vector<8x72xf32>
    %103 = arith.mulf %100, %102 : vector<8x72xf32>
    %cst_118 = arith.constant dense<0.000000e+00> : vector<8xf32>
    %104 = vector.multi_reduction <add>, %103, %cst_118 [1] : vector<8x72xf32> to vector<8xf32>
    %105 = vector.shape_cast %104 : vector<8xf32> to vector<8x1xf32>
    %106 = arith.mulf %100, %100 : vector<8x72xf32>
    %107 = vector.broadcast %101 : vector<1x72xf32> to vector<8x72xf32>
    %108 = arith.mulf %106, %107 : vector<8x72xf32>
    %cst_119 = arith.constant dense<0.000000e+00> : vector<8xf32>
    %109 = vector.multi_reduction <add>, %108, %cst_119 [1] : vector<8x72xf32> to vector<8xf32>
    %110 = vector.shape_cast %109 : vector<8xf32> to vector<8x1xf32>
    %cst_120 = arith.constant 1.562500e-02 : f32
    %111 = vector.broadcast %cst_120 : f32 to vector<8x1xf32>
    %112 = arith.mulf %105, %111 : vector<8x1xf32>
    %cst_121 = arith.constant 1.562500e-02 : f32
    %113 = vector.broadcast %cst_121 : f32 to vector<8x1xf32>
    %114 = arith.mulf %110, %113 : vector<8x1xf32>
    %115 = arith.mulf %112, %112 : vector<8x1xf32>
    %116 = arith.subf %114, %115 : vector<8x1xf32>
    %cst_122 = arith.constant 0.000000e+00 : f32
    %117 = vector.broadcast %cst_122 : f32 to vector<8x1xf32>
    %118 = arith.maximumf %116, %117 : vector<8x1xf32>
    %119 = vector.broadcast %112 : vector<8x1xf32> to vector<8x72xf32>
    %120 = arith.subf %100, %119 : vector<8x72xf32>
    %cst_123 = arith.constant 9.99999974E-6 : f32
    %121 = vector.broadcast %cst_123 : f32 to vector<8x1xf32>
    %122 = arith.addf %118, %121 : vector<8x1xf32>
    %123 = math.rsqrt %122 : vector<8x1xf32>
    %124 = vector.broadcast %123 : vector<8x1xf32> to vector<8x72xf32>
    %125 = arith.mulf %120, %124 : vector<8x72xf32>
    %cst_124 = arith.constant 0.000000e+00 : f32
    %126 = vector.broadcast %cst_124 : f32 to vector<8x72xf32>
    %127 = arith.maximumf %125, %126 : vector<8x72xf32>
    %c0_125 = arith.constant 0 : index
    %c0_126 = arith.constant 0 : index
    %c0_127 = arith.constant 0 : index
    %128 = vector.load %arg6[%c0_125, %c0_126, %c0_127] : memref<1x8x72xf32, #tpu.memory_space<vmem>>, vector<1x8x72xf32>
    %129 = vector.shape_cast %128 : vector<1x8x72xf32> to vector<8x72xf32>
    %130 = vector.shape_cast %127 : vector<8x72xf32> to vector<1x8x72xf32>
    tpu.vector_store %arg6[%c0_125, %c0_126, %c0_127], %130 {strides = array<i32>} : memref<1x8x72xf32, #tpu.memory_space<vmem>>, vector<1x8x72xf32>,
    return
  }
  func.func @transform_0(%arg0: i32, %arg1: i32) -> (i32, i32, i32, i32) {
    %c0_i32 = arith.constant 0 : i32
    %c0_i32_0 = arith.constant 0 : i32
    %c0_i32_1 = arith.constant 0 : i32
    %c0_i32_2 = arith.constant 0 : i32
    return %arg0, %c0_i32, %c0_i32_0, %c0_i32_1 : i32, i32, i32, i32
  }
  func.func @transform_1(%arg0: i32, %arg1: i32) -> (i32, i32, i32) {
    %c0_i32 = arith.constant 0 : i32
    %c0_i32_0 = arith.constant 0 : i32
    %c0_i32_1 = arith.constant 0 : i32
    return %c0_i32, %arg1, %c0_i32_0 : i32, i32, i32
  }
  func.func @transform_2(%arg0: i32, %arg1: i32) -> (i32, i32) {
    %c0_i32 = arith.constant 0 : i32
    %c0_i32_0 = arith.constant 0 : i32
    return %arg1, %c0_i32 : i32, i32
  }
  func.func @transform_3(%arg0: i32, %arg1: i32) -> (i32, i32) {
    %c0_i32 = arith.constant 0 : i32
    %c0_i32_0 = arith.constant 0 : i32
    %c0_i32_1 = arith.constant 0 : i32
    return %c0_i32, %c0_i32_0 : i32, i32
  }
  func.func @transform_4(%arg0: i32, %arg1: i32) -> (i32, i32, i32) {
    %c0_i32 = arith.constant 0 : i32
    %c0_i32_0 = arith.constant 0 : i32
    return %arg0, %arg1, %c0_i32 : i32, i32, i32
  }
}

</mosaic_0001>

<llo_original>
// kernel: contracting_block_gen.1
$region0: #{contracting_block_gen.1}
  #allocation0 [shape = 'u32[]', space=smem, size = 0x4, offset = 0x4, fixed_abs, tag = 'smem constant byte address 0x4 - core index']
  #allocation1 [shape = 'u32[144,128]{1,0:T(1,128)}', space=vmem, size = 0x12000, scoped, tag = 'internal scratch']
  %s0 = inlined_call_operand.hbm [shape: bf16[2,4,90,4], index: 0, kind: input, shape index: {}]
  %s1 = inlined_call_operand.hbm [shape: bf16[9,8,4], index: 1, kind: input, shape index: {}]
  %s2 = inlined_call_operand.hbm [shape: f32[8,1], index: 2, kind: input, shape index: {}]
  %s3 = inlined_call_operand.hbm [shape: f32[1,72], index: 3, kind: input, shape index: {}]
  %s4 = inlined_call_operand.hbm [shape: f32[2,8,72], index: 4, kind: output, shape index: {}]
  %s5 = sld [smem:[#allocation0]]
  $region65: #{contracting_block_gen.1} parent=0
    _
  %s7 = ssub.s32 1, %s5
  %s8 = scalar_select 0, %s7, %s5
  $region1: #{contracting_block_gen.1} parent=0
    #allocation2 [shape = 'u8[196608]{0}', space=vmem, size = 0x30000, scoped, tag = 'input window, operand 0']
    #allocation3 [shape = 's32[2]{0}', space=sflag, size = 0x8, scoped, tag = 'scoped memory for contracting_block_gen.1']
    #allocation4 [shape = 's32[2]{0}', space=sflag, size = 0x8, scoped, tag = 'scoped memory for contracting_block_gen.1']
    #allocation5 [shape = 'u8[18432]{0}', space=vmem, size = 0x4800, scoped, tag = 'input window, operand 1, single buffered']
    #allocation6 [shape = 's32[1]{0}', space=sflag, size = 0x4, scoped, tag = 'scoped memory for contracting_block_gen.1']
    #allocation7 [shape = 'u8[4096]{0}', space=vmem, size = 0x1000, scoped, tag = 'input window, operand 2, single buffered']
    #allocation8 [shape = 'u8[512]{0}', space=vmem, size = 0x400, scoped, tag = 'input window, operand 3, single buffered']
    #allocation9 [shape = 's32[1]{0}', space=sflag, size = 0x4, scoped, tag = 'scoped memory for contracting_block_gen.1']
    #allocation10 [shape = 'u8[8192]{0}', space=vmem, size = 0x2000, scoped, tag = 'output window, operand 0']
    %9 = vsyncpa [#allocation3], 0
    %s10 = scalar_lea.sflag [#allocation3], 1
    %11 = vsyncpa %s10, 0
    %12 = vsyncpa [#allocation6], 0
    %13 = vsyncpa [#allocation9], 0
    %14 = vsyncpa [#allocation4], 0
    %s15 = scalar_lea.sflag [#allocation4], 1
    %16 = vsyncpa %s15, 0
    loop: start=0, step=1, limit=4
    $region2: #{contracting_block_gen.1} parent=1 // loop_pre_header
      _
    $region3: #{contracting_block_gen.1} parent=1 // loop_header
      %s18 = sphi 0, %s22
      %p19 = scmp.ge.s32.totalorder %s18, 4
      %s25 = sphi 0, %s37
      %s26 = sphi 0, %s33
      %s27 = sphi 0, %s25
      %s28 = sphi 0, %s26
      %s29 = sphi 0, %s27
      %s30 = sphi 0, %s28
      %s40 = sphi 0, %s42
      %s43 = sphi 0, %s40
      %s44 = sphi 0, %s43
      %s60 = sphi 0, %s44
      %s66 = sphi 0, %s68
      %s69 = sphi 0, %s66
      %s70 = sphi 0, %s69
      %s86 = sphi 0, %s70
      %s92 = sphi 0, %s94
      %s95 = sphi 0, %s92
      %s96 = sphi 0, %s95
      %s112 = sphi 0, %s96
      %s116 = sphi 0, %s116
      %s118 = sphi 0, %s116
      %s119 = sphi 0, %s118
      %s133 = sphi 0, %s119
      %s141 = sphi 0, %s143
      %s144 = sphi 0, %s141
      %s145 = sphi 0, %s144
      %s161 = sphi 0, %s145
    $region4: #{contracting_block_gen.1} parent=1 // loop_header_branch
      %21 = sbr.rel (%p19) target = $region8
    $region5: #{contracting_block_gen.1} parent=1 // loop_body
      %s23 = ssub.s32 %s18, 1
      %s24 = ssub.s32 %s18, 2
      %s31 = sadd.s32 1, %s26
      %p32 = scmp.ge.s32.totalorder %s31, 1
      %s33 = scalar_select %p32, 0, %s31
      %s34 = sadd.s32 1, %s25
      %s35 = scalar_select %p32, %s34, %s25
      %p36 = scmp.ge.s32.totalorder %s35, 2
      %s37 = scalar_select %p36, 0, %s35
      %s38 = ssub.s32 %s25, %s37
      %p39 = scmp.eq.s32.totalorder %s38, 0
      %s41 = sadd.s32 %s40, 1
      %s42 = scalar_select %p39, %s40, %s41
      %p45 = pneg %p39
      %p46 = scmp.eq.s32.totalorder %s18, 1
      %p47 = por %p45, %p46
      %p48 = scmp.ne.s32.totalorder %s40, %s43
      %p49 = scmp.eq.s32.totalorder %s18, 0
      %p50 = por %p48, %p49
      %p51 = scmp.ne.s32.totalorder %s40, %s43
      %p52 = scmp.eq.s32.totalorder %s23, 1
      %p53 = por %p51, %p52
      %p54 = scmp.ne.s32.totalorder %s43, %s44
      %p55 = scmp.eq.s32.totalorder %s23, 0
      %p56 = por %p54, %p55
      %p57 = scmp.ne.s32.totalorder %s43, %s44
      %p58 = scmp.eq.s32.totalorder %s24, 1
      %p59 = por %p57, %p58
      %p61 = scmp.ne.s32.totalorder %s44, %s60
      %p62 = scmp.eq.s32.totalorder %s24, 0
      %p63 = por %p61, %p62
      %s64 = ssub.s32 %s26, %s33
      %p65 = scmp.eq.s32.totalorder %s64, 0
      %s67 = sadd.s32 %s66, 1
      %s68 = scalar_select %p65, %s66, %s67
      %p71 = pneg %p65
      %p72 = scmp.eq.s32.totalorder %s18, 1
      %p73 = por %p71, %p72
      %p74 = scmp.ne.s32.totalorder %s66, %s69
      %p75 = scmp.eq.s32.totalorder %s18, 0
      %p76 = por %p74, %p75
      %p77 = scmp.ne.s32.totalorder %s66, %s69
      %p78 = scmp.eq.s32.totalorder %s23, 1
      %p79 = por %p77, %p78
      %p80 = scmp.ne.s32.totalorder %s69, %s70
      %p81 = scmp.eq.s32.totalorder %s23, 0
      %p82 = por %p80, %p81
      %p83 = scmp.ne.s32.totalorder %s69, %s70
      %p84 = scmp.eq.s32.totalorder %s24, 1
      %p85 = por %p83, %p84
      %p87 = scmp.ne.s32.totalorder %s70, %s86
      %p88 = scmp.eq.s32.totalorder %s24, 0
      %p89 = por %p87, %p88
      %s90 = ssub.s32 %s26, %s33
      %p91 = scmp.eq.s32.totalorder %s90, 0
      %s93 = sadd.s32 %s92, 1
      %s94 = scalar_select %p91, %s92, %s93
      %p97 = pneg %p91
      %p98 = scmp.eq.s32.totalorder %s18, 1
      %p99 = por %p97, %p98
      %p100 = scmp.ne.s32.totalorder %s92, %s95
      %p101 = scmp.eq.s32.totalorder %s18, 0
      %p102 = por %p100, %p101
      %p103 = scmp.ne.s32.totalorder %s92, %s95
      %p104 = scmp.eq.s32.totalorder %s23, 1
      %p105 = por %p103, %p104
      %p106 = scmp.ne.s32.totalorder %s95, %s96
      %p107 = scmp.eq.s32.totalorder %s23, 0
      %p108 = por %p106, %p107
      %p109 = scmp.ne.s32.totalorder %s95, %s96
      %p110 = scmp.eq.s32.totalorder %s24, 1
      %p111 = por %p109, %p110
      %p113 = scmp.ne.s32.totalorder %s96, %s112
      %p114 = scmp.eq.s32.totalorder %s24, 0
      %p115 = por %p113, %p114
      %s117 = sadd.s32 %s116, 1
      %p120 = scmp.eq.s32.totalorder %s18, 1
      %p121 = scmp.ne.s32.totalorder %s116, %s118
      %p122 = scmp.eq.s32.totalorder %s18, 0
      %p123 = por %p121, %p122
      %p124 = scmp.ne.s32.totalorder %s116, %s118
      %p125 = scmp.eq.s32.totalorder %s23, 1
      %p126 = por %p124, %p125
      %p127 = scmp.ne.s32.totalorder %s118, %s119
      %p128 = scmp.eq.s32.totalorder %s23, 0
      %p129 = por %p127, %p128
      %p130 = scmp.ne.s32.totalorder %s118, %s119
      %p131 = scmp.eq.s32.totalorder %s24, 1
      %p132 = por %p130, %p131
      %p134 = scmp.ne.s32.totalorder %s119, %s133
      %p135 = scmp.eq.s32.totalorder %s24, 0
      %p136 = por %p134, %p135
      %s137 = ssub.s32 %s25, %s37
      %s138 = ssub.s32 %s26, %s33
      %s139 = sor.u32 %s137, %s138
      %p140 = scmp.eq.s32.totalorder %s139, 0
      %s142 = sadd.s32 %s141, 1
      %s143 = scalar_select %p140, %s141, %s142
      %p146 = pneg %p140
      %p147 = scmp.eq.s32.totalorder %s18, 1
      %p148 = por %p146, %p147
      %p149 = scmp.ne.s32.totalorder %s141, %s144
      %p150 = scmp.eq.s32.totalorder %s18, 0
      %p151 = por %p149, %p150
      %p152 = scmp.ne.s32.totalorder %s141, %s144
      %p153 = scmp.eq.s32.totalorder %s23, 1
      %p154 = por %p152, %p153
      %p155 = scmp.ne.s32.totalorder %s144, %s145
      %p156 = scmp.eq.s32.totalorder %s23, 0
      %p157 = por %p155, %p156
      %p158 = scmp.ne.s32.totalorder %s144, %s145
      %p159 = scmp.eq.s32.totalorder %s24, 1
      %p160 = por %p158, %p159
      %p162 = scmp.ne.s32.totalorder %s145, %s161
      %p163 = scmp.eq.s32.totalorder %s24, 0
      %p164 = por %p162, %p163
      %p165 = scmp.le.s32.totalorder 1, %s18
      %p166 = scmp.lt.s32.totalorder %s18, 3
      %p167 = pnand %p165, %p166
      %p168 = pneg %p167
      // Predicated region
      $region9: #{contracting_block_gen.1} parent=5 // pred_check
        _
      $region10: #{contracting_block_gen.1} parent=5 // pred_check_branch
        %170 = sbr.rel (%p167) target = $region12
      $region11: #{contracting_block_gen.1} parent=5 // pred_region
        %s171 = ssub.s32 %s18, 1
        // Predicated region
        $region13: #{contracting_block_gen.1} parent=11 // pred_check
          %p172 = pneg %p82
        $region14: #{contracting_block_gen.1} parent=11 // pred_check_branch
          %174 = sbr.rel (%p172) target = $region16
        $region15: #{contracting_block_gen.1} parent=11 // pred_region
          %s176 = ssub.s32 576, 576
          %177 = vsyncadd [#allocation6], %s176
          %s178 = smul.addr %s28, 64
          %s179 = scalar_lea.hbm %s1, %s178
          %s180 = sshll.u32 [#allocation5], 4
          %s181 = int_to_ptr.vmem [resolvable:$true] %s180
          %186 = dma.hbm_to_vmem [thread:$0]  %s179, 576, %s181, [#allocation6], 64, 64, 4
        $region16: #{contracting_block_gen.1} parent=11 // pred_fallthru
          _
        // Predicated region
        $region17: #{contracting_block_gen.1} parent=11 // pred_check
          %p187 = pneg %p108
        $region18: #{contracting_block_gen.1} parent=11 // pred_check_branch
          %189 = sbr.rel (%p187) target = $region20
        $region19: #{contracting_block_gen.1} parent=11 // pred_region
          %s191 = ssub.s32 128, 128
          %192 = vsyncadd [#allocation6], %s191
          %s193 = smul.addr %s28, 128
          %s194 = scalar_lea.hbm %s2, %s193
          %s196 = sshll.u32 [#allocation7], 4
          %s197 = int_to_ptr.vmem [resolvable:$true] %s196
          %199 = dma.hbm_to_vmem [thread:$0]  %s194, 128, %s197, [#allocation6]
        $region20: #{contracting_block_gen.1} parent=11 // pred_fallthru
          _
        // Predicated region
        $region21: #{contracting_block_gen.1} parent=11 // pred_check
          %p200 = pneg %p129
        $region22: #{contracting_block_gen.1} parent=11 // pred_check_branch
          %202 = sbr.rel (%p200) target = $region24
        $region23: #{contracting_block_gen.1} parent=11 // pred_region
          %s204 = ssub.s32 16, 16
          %205 = vsyncadd [#allocation9], %s204
          %s207 = sshll.u32 [#allocation8], 4
          %s208 = int_to_ptr.vmem [resolvable:$true] %s207
          %210 = dma.hbm_to_vmem [thread:$0]  %s3, 16, %s208, [#allocation9]
        $region24: #{contracting_block_gen.1} parent=11 // pred_fallthru
          _
      $region12: #{contracting_block_gen.1} parent=5 // pred_fallthru
        _
      %p211 = scmp.lt.s32.totalorder %s18, 2
      // Predicated region
      $region25: #{contracting_block_gen.1} parent=5 // pred_check
        %p212 = pneg %p211
      $region26: #{contracting_block_gen.1} parent=5 // pred_check_branch
        %214 = sbr.rel (%p212) target = $region28
      $region27: #{contracting_block_gen.1} parent=5 // pred_region
        // Predicated region
        $region29: #{contracting_block_gen.1} parent=27 // pred_check
          %p215 = pneg %p50
        $region30: #{contracting_block_gen.1} parent=27 // pred_check_branch
          %217 = sbr.rel (%p215) target = $region32
        $region31: #{contracting_block_gen.1} parent=27 // pred_region
          %s218 = sand.u32 %s40, 1
          %s219 = scalar_lea.sflag [#allocation3], %s218
          %s220 = sand.u32 %s40, 1
          %s221 = smul.addr %s220, 192
          %s222 = scalar_lea.vmem [#allocation2], %s221
          %s224 = ssub.s32 3072, 3072
          %225 = vsyncadd %s219, %s224
          %s226 = smul.addr %s25, 48
          %s227 = smul.addr %s226, 64
          %s228 = scalar_lea.hbm %s0, %s227
          %s229 = sshll.u32 %s222, 4
          %s230 = int_to_ptr.vmem [resolvable:$true] %s229
          %235 = dma.hbm_to_vmem [thread:$0]  %s228, 3072, %s230, %s219, 64, 64, 4
        $region32: #{contracting_block_gen.1} parent=27 // pred_fallthru
          _
      $region28: #{contracting_block_gen.1} parent=5 // pred_fallthru
        _
      %p236 = scmp.le.s32.totalorder 1, %s18
      %p237 = scmp.lt.s32.totalorder %s18, 3
      %p238 = pnand %p236, %p237
      %p239 = pneg %p238
      // Predicated region
      $region33: #{contracting_block_gen.1} parent=5 // pred_check
        _
      $region34: #{contracting_block_gen.1} parent=5 // pred_check_branch
        %241 = sbr.rel (%p238) target = $region36
      $region35: #{contracting_block_gen.1} parent=5 // pred_region
        %s242 = ssub.s32 %s18, 1
        %s243 = sand.u32 %s43, 1
        %s244 = scalar_lea.sflag [#allocation3], %s243
        %s245 = sand.u32 %s43, 1
        %s246 = smul.addr %s245, 192
        %s247 = scalar_lea.vmem [#allocation2], %s246
        // Predicated region
        $region37: #{contracting_block_gen.1} parent=35 // pred_check
          %p248 = pneg %p56
        $region38: #{contracting_block_gen.1} parent=35 // pred_check_branch
          %250 = sbr.rel (%p248) target = $region40
        $region39: #{contracting_block_gen.1} parent=35 // pred_region
          %251 = dma.done %s244, 3072
        $region40: #{contracting_block_gen.1} parent=35 // pred_fallthru
          _
        // Predicated region
        $region41: #{contracting_block_gen.1} parent=35 // pred_check
          %p252 = pneg %p82
        $region42: #{contracting_block_gen.1} parent=35 // pred_check_branch
          %254 = sbr.rel (%p252) target = $region44
        $region43: #{contracting_block_gen.1} parent=35 // pred_region
          %255 = dma.done [#allocation6], 576
        $region44: #{contracting_block_gen.1} parent=35 // pred_fallthru
          _
        // Predicated region
        $region45: #{contracting_block_gen.1} parent=35 // pred_check
          %p256 = pneg %p108
        $region46: #{contracting_block_gen.1} parent=35 // pred_check_branch
          %258 = sbr.rel (%p256) target = $region48
        $region47: #{contracting_block_gen.1} parent=35 // pred_region
          %259 = dma.done [#allocation6], 128
        $region48: #{contracting_block_gen.1} parent=35 // pred_fallthru
          _
        // Predicated region
        $region49: #{contracting_block_gen.1} parent=35 // pred_check
          %p260 = pneg %p129
        $region50: #{contracting_block_gen.1} parent=35 // pred_check_branch
          %262 = sbr.rel (%p260) target = $region52
        $region51: #{contracting_block_gen.1} parent=35 // pred_region
          %263 = dma.done [#allocation9], 16
        $region52: #{contracting_block_gen.1} parent=35 // pred_fallthru
          _
        %s264 = sand.u32 %s43, 1
        %s265 = scalar_lea.sflag [#allocation3], %s264
        %s266 = sand.u32 %s43, 1
        %s267 = smul.addr %s266, 192
        %s268 = scalar_lea.vmem [#allocation2], %s267
        %p269 = pneg %p56
        %p270 = pneg %p53
        %p271 = pneg %p82
        %p272 = pneg %p79
        %p273 = pneg %p108
        %p274 = pneg %p105
        %p275 = pneg %p129
        %p276 = pneg %p126
        %p277 = pneg %p157
        %p278 = pneg %p154
        %s279 = sand.u32 %s144, 1
        %s280 = scalar_lea.sflag [#allocation4], %s279
        %s281 = sand.u32 %s144, 1
        %s282 = smul.addr %s281, 8
        %s283 = scalar_lea.vmem [#allocation10], %s282
        %v285 = vld [vmem:[%s247] sm:$0xf]
        %v286 = vld [vmem:[%s247 + $0x4] sm:$0xf]
        %v287 = vld [vmem:[%s247 + $0x8] sm:$0xf]
        %v288 = vld [vmem:[%s247 + $0xc] sm:$0xf]
        %v289 = vld [vmem:[%s247 + $0x10] sm:$0xf]
        %v290 = vld [vmem:[%s247 + $0x14] sm:$0xf]
        %v291 = vld [vmem:[%s247 + $0x18] sm:$0xf]
        %v292 = vld [vmem:[%s247 + $0x1c] sm:$0xf]
        %v293 = vld [vmem:[%s247 + $0x20] sm:$0xf]
        %v294 = vld [vmem:[#allocation5] sm:$0xf]
        %v304 = vunpack.c.l.b16 %v285
        %v305 = vunpack.c.l.b16 %v286
        %v306 = vunpack.c.l.b16 %v287
        %v307 = vunpack.c.l.b16 %v288
        %v308 = vunpack.c.l.b16 %v289
        %v309 = vunpack.c.l.b16 %v290
        %v310 = vunpack.c.l.b16 %v291
        %v311 = vunpack.c.l.b16 %v292
        %v312 = vunpack.c.l.b16 %v293
        %v313 = vpack.c.b16 %v305, %v304
        %v314 = vpack.c.b16 %v307, %v306
        %v315 = vpack.c.b16 %v309, %v308
        %v316 = vpack.c.b16 %v311, %v310
        %v317 = vpack.c.b16 %v312, %v312
        %vm318 = vcmask 31744
        %v320 = vsel %vm318, %v294, 0
        %v323 = vsel %vm318, %v313, 0
        %v326 = vsel %vm318, %v314, 0
        %v329 = vsel %vm318, %v315, 0
        %v332 = vsel %vm318, %v316, 0
        %v335 = vsel %vm318, %v317, 0
        %337 = vmatprep.subr.bf16.mxu0 0
        %338 = vmatpush1.bf16.xpose.msra.mxu0 %v323
        %339 = vmatprep.subr.bf16.mxu0 0
        %340 = vmatpush1.bf16.xpose.msra.mxu0 %v326
        %341 = vmatprep.subr.bf16.mxu0 0
        %342 = vmatpush1.bf16.xpose.msra.mxu0 %v329
        %343 = vmatprep.subr.bf16.mxu0 0
        %344 = vmatpush1.bf16.xpose.msra.mxu0 %v332
        %345 = vmatprep.subr.bf16.mxu0 0
        %346 = vmatpush1.bf16.xpose.msra.mxu0 %v335
        %347 = vmatprep.subr.bf16.mxu0 0
        %348 = vmatpush1.bf16.xpose.msra.mxu0 0
        %349 = vmatprep.subr.bf16.mxu0 0
        %350 = vmatpush1.bf16.xpose.msra.mxu0 0
        %351 = vmatprep.subr.bf16.mxu0 0
        %352 = vmatpush1.bf16.xpose.msra.mxu0 0
        %353 = vmatprep.subr.bf16.mxu0 0
        %354 = vmatpush1.bf16.xpose.msra.mxu0 0
        %355 = vmatprep.subr.bf16.mxu0 0
        %356 = vmatpush1.bf16.xpose.msra.mxu0 0
        %357 = vmatprep.subr.bf16.mxu0 0
        %358 = vmatpush1.bf16.xpose.msra.mxu0 0
        %359 = vmatprep.subr.bf16.mxu0 0
        %360 = vmatpush1.bf16.xpose.msra.mxu0 0
        %361 = vmatprep.subr.bf16.mxu0 0
        %362 = vmatpush1.bf16.xpose.msra.mxu0 0
        %363 = vmatprep.subr.bf16.mxu0 0
        %364 = vmatpush1.bf16.xpose.msra.mxu0 0
        %365 = vmatprep.subr.bf16.mxu0 0
        %366 = vmatpush1.bf16.xpose.msra.mxu0 0
        %367 = vmatprep.subr.bf16.mxu0 0
        %368 = vmatpush1.bf16.xpose.msra.mxu0 0
        %369 = vmatprep.mubr.bf16.mxu0 0
        %370 = vmatmul.mubr.bf16.gmra.mrb[0].mxu0 %v320
        %v371 = vpop.f32.mrb[0].mxu0
        %v372 = vadd.f32 0.0, %v371
        %v373 = vpop.f32.mrb[0].mxu0
        %v374 = vpop.f32.mrb[0].mxu0
        %v375 = vpop.f32.mrb[0].mxu0
        %376 = vdwg.mxu0
        %vm377 = vcmask 588800
        %378 = vst.msk [vmem:[%s283] sm:$0xff] %vm377, %v372
        %s379 = scalar_lea.vmem %s247, 48 [#allocation2]
        %v380 = vld [vmem:[%s379] sm:$0xf]
        %v381 = vld [vmem:[%s379 + $0x4] sm:$0xf]
        %v382 = vld [vmem:[%s379 + $0x8] sm:$0xf]
        %v383 = vld [vmem:[%s379 + $0xc] sm:$0xf]
        %v384 = vld [vmem:[%s379 + $0x10] sm:$0xf]
        %v385 = vld [vmem:[%s379 + $0x14] sm:$0xf]
        %v386 = vld [vmem:[%s379 + $0x18] sm:$0xf]
        %v387 = vld [vmem:[%s379 + $0x1c] sm:$0xf]
        %v388 = vld [vmem:[%s379 + $0x20] sm:$0xf]
        %s389 = scalar_lea.vmem [#allocation5], 4
        %v390 = vld [vmem:[%s389] sm:$0xf]
        %v400 = vunpack.c.l.b16 %v380
        %v401 = vunpack.c.l.b16 %v381
        %v402 = vunpack.c.l.b16 %v382
        %v403 = vunpack.c.l.b16 %v383
        %v404 = vunpack.c.l.b16 %v384
        %v405 = vunpack.c.l.b16 %v385
        %v406 = vunpack.c.l.b16 %v386
        %v407 = vunpack.c.l.b16 %v387
        %v408 = vunpack.c.l.b16 %v388
        %v409 = vpack.c.b16 %v401, %v400
        %v410 = vpack.c.b16 %v403, %v402
        %v411 = vpack.c.b16 %v405, %v404
        %v412 = vpack.c.b16 %v407, %v406
        %v413 = vpack.c.b16 %v408, %v408
        %v415 = vsel %vm318, %v390, 0
        %v418 = vsel %vm318, %v409, 0
        %v421 = vsel %vm318, %v410, 0
        %v424 = vsel %vm318, %v411, 0
        %v427 = vsel %vm318, %v412, 0
        %v430 = vsel %vm318, %v413, 0
        %432 = vmatprep.subr.bf16.mxu0 0
        %433 = vmatpush1.bf16.xpose.msra.mxu0 %v418
        %434 = vmatprep.subr.bf16.mxu0 0
        %435 = vmatpush1.bf16.xpose.msra.mxu0 %v421
        %436 = vmatprep.subr.bf16.mxu0 0
        %437 = vmatpush1.bf16.xpose.msra.mxu0 %v424
        %438 = vmatprep.subr.bf16.mxu0 0
        %439 = vmatpush1.bf16.xpose.msra.mxu0 %v427
        %440 = vmatprep.subr.bf16.mxu0 0
        %441 = vmatpush1.bf16.xpose.msra.mxu0 %v430
        %442 = vmatprep.subr.bf16.mxu0 0
        %443 = vmatpush1.bf16.xpose.msra.mxu0 0
        %444 = vmatprep.subr.bf16.mxu0 0
        %445 = vmatpush1.bf16.xpose.msra.mxu0 0
        %446 = vmatprep.subr.bf16.mxu0 0
        %447 = vmatpush1.bf16.xpose.msra.mxu0 0
        %448 = vmatprep.subr.bf16.mxu0 0
        %449 = vmatpush1.bf16.xpose.msra.mxu0 0
        %450 = vmatprep.subr.bf16.mxu0 0
        %451 = vmatpush1.bf16.xpose.msra.mxu0 0
        %452 = vmatprep.subr.bf16.mxu0 0
        %453 = vmatpush1.bf16.xpose.msra.mxu0 0
        %454 = vmatprep.subr.bf16.mxu0 0
        %455 = vmatpush1.bf16.xpose.msra.mxu0 0
        %456 = vmatprep.subr.bf16.mxu0 0
        %457 = vmatpush1.bf16.xpose.msra.mxu0 0
        %458 = vmatprep.subr.bf16.mxu0 0
        %459 = vmatpush1.bf16.xpose.msra.mxu0 0
        %460 = vmatprep.subr.bf16.mxu0 0
        %461 = vmatpush1.bf16.xpose.msra.mxu0 0
        %462 = vmatprep.subr.bf16.mxu0 0
        %463 = vmatpush1.bf16.xpose.msra.mxu0 0
        %464 = vmatprep.mubr.bf16.mxu0 0
        %465 = vmatmul.mubr.bf16.gmra.mrb[0].mxu0 %v415
        %v466 = vpop.f32.mrb[0].mxu0
        %v467 = vadd.f32 0.0, %v466
        %v468 = vpop.f32.mrb[0].mxu0
        %v469 = vpop.f32.mrb[0].mxu0
        %v470 = vpop.f32.mrb[0].mxu0
        %471 = vdwg.mxu0
        %v472 = vld [vmem:[%s283] sm:$0xff]
        %v473 = vadd.f32 %v472, %v467
        %474 = vst.msk [vmem:[%s283] sm:$0xff] %vm377, %v473
        %v475 = vld [vmem:[%s247] sm:$0xf]
        %v476 = vld [vmem:[%s247 + $0x4] sm:$0xf]
        %v477 = vld [vmem:[%s247 + $0x8] sm:$0xf]
        %v478 = vld [vmem:[%s247 + $0xc] sm:$0xf]
        %v479 = vld [vmem:[%s247 + $0x10] sm:$0xf]
        %v480 = vld [vmem:[%s247 + $0x14] sm:$0xf]
        %v481 = vld [vmem:[%s247 + $0x18] sm:$0xf]
        %v482 = vld [vmem:[%s247 + $0x1c] sm:$0xf]
        %v483 = vld [vmem:[%s247 + $0x20] sm:$0xf]
        %v484 = vld [vmem:[%s247 + $0x24] sm:$0x1]
        %s485 = scalar_lea.vmem [#allocation5], 8
        %v486 = vld [vmem:[%s485] sm:$0xf]
        %v497 = vunpack.c.l.b16 %v475
        %v498 = vunpack.c.l.b16 %v476
        %v499 = vunpack.c.l.b16 %v477
        %v500 = vunpack.c.l.b16 %v478
        %v501 = vunpack.c.l.b16 %v479
        %v502 = vunpack.c.l.b16 %v480
        %v503 = vunpack.c.l.b16 %v481
        %v504 = vunpack.c.l.b16 %v482
        %v505 = vunpack.c.l.b16 %v483
        %v506 = vunpack.c.l.b16 %v484
        %v507 = vpack.c.b16 %v498, %v497
        %v508 = vpack.c.b16 %v500, %v499
        %v509 = vpack.c.b16 %v502, %v501
        %v510 = vpack.c.b16 %v504, %v503
        %v511 = vpack.c.b16 %v506, %v505
        %vm512 = vsmask.f32 7424
        %v514 = vshrl.u32 %v507, 16
        %v516 = vshll.u32 %v507, 16
        %v518 = vrot.slane %v516, 1
        %v519 = vor.u32 %v514, %v518
        %v521 = vshll.u32 %v508, 16
        %v523 = vrot.slane %v521, 1
        %v524 = vsel %vm512, %v519, %v523
        %v525 = vshrl.u32 %v508, 16
        %v527 = vor.u32 %v525, %v523
        %v529 = vshll.u32 %v509, 16
        %v531 = vrot.slane %v529, 1
        %v532 = vsel %vm512, %v527, %v531
        %v533 = vshrl.u32 %v509, 16
        %v535 = vor.u32 %v533, %v531
        %v537 = vshll.u32 %v510, 16
        %v539 = vrot.slane %v537, 1
        %v540 = vsel %vm512, %v535, %v539
        %v541 = vshrl.u32 %v510, 16
        %v543 = vor.u32 %v541, %v539
        %v545 = vshll.u32 %v511, 16
        %v547 = vrot.slane %v545, 1
        %v548 = vsel %vm512, %v543, %v547
        %v549 = vshrl.u32 %v511, 16
        %v551 = vor.u32 %v549, %v547
        %v553 = vsel %vm318, %v486, 0
        %v556 = vsel %vm318, %v524, 0
        %v559 = vsel %vm318, %v532, 0
        %v562 = vsel %vm318, %v540, 0
        %v565 = vsel %vm318, %v548, 0
        %v568 = vsel %vm318, %v551, 0
        %570 = vmatprep.subr.bf16.mxu0 0
        %571 = vmatpush1.bf16.xpose.msra.mxu0 %v556
        %572 = vmatprep.subr.bf16.mxu0 0
        %573 = vmatpush1.bf16.xpose.msra.mxu0 %v559
        %574 = vmatprep.subr.bf16.mxu0 0
        %575 = vmatpush1.bf16.xpose.msra.mxu0 %v562
        %576 = vmatprep.subr.bf16.mxu0 0
        %577 = vmatpush1.bf16.xpose.msra.mxu0 %v565
        %578 = vmatprep.subr.bf16.mxu0 0
        %579 = vmatpush1.bf16.xpose.msra.mxu0 %v568
        %580 = vmatprep.subr.bf16.mxu0 0
        %581 = vmatpush1.bf16.xpose.msra.mxu0 0
        %582 = vmatprep.subr.bf16.mxu0 0
        %583 = vmatpush1.bf16.xpose.msra.mxu0 0
        %584 = vmatprep.subr.bf16.mxu0 0
        %585 = vmatpush1.bf16.xpose.msra.mxu0 0
        %586 = vmatprep.subr.bf16.mxu0 0
        %587 = vmatpush1.bf16.xpose.msra.mxu0 0
        %588 = vmatprep.subr.bf16.mxu0 0
        %589 = vmatpush1.bf16.xpose.msra.mxu0 0
        %590 = vmatprep.subr.bf16.mxu0 0
        %591 = vmatpush1.bf16.xpose.msra.mxu0 0
        %592 = vmatprep.subr.bf16.mxu0 0
        %593 = vmatpush1.bf16.xpose.msra.mxu0 0
        %594 = vmatprep.subr.bf16.mxu0 0
        %595 = vmatpush1.bf16.xpose.msra.mxu0 0
        %596 = vmatprep.subr.bf16.mxu0 0
        %597 = vmatpush1.bf16.xpose.msra.mxu0 0
        %598 = vmatprep.subr.bf16.mxu0 0
        %599 = vmatpush1.bf16.xpose.msra.mxu0 0
        %600 = vmatprep.subr.bf16.mxu0 0
        %601 = vmatpush1.bf16.xpose.msra.mxu0 0
        %602 = vmatprep.mubr.bf16.mxu0 0
        %603 = vmatmul.mubr.bf16.gmra.mrb[0].mxu0 %v553
        %v604 = vpop.f32.mrb[0].mxu0
        %v605 = vadd.f32 0.0, %v604
        %v606 = vpop.f32.mrb[0].mxu0
        %v607 = vpop.f32.mrb[0].mxu0
        %v608 = vpop.f32.mrb[0].mxu0
        %609 = vdwg.mxu0
        %v610 = vld [vmem:[%s283] sm:$0xff]
        %v611 = vadd.f32 %v610, %v605
        %612 = vst.msk [vmem:[%s283] sm:$0xff] %vm377, %v611
        %s613 = scalar_lea.vmem %s247, 96 [#allocation2]
        %v614 = vld [vmem:[%s613] sm:$0xf]
        %v615 = vld [vmem:[%s613 + $0x4] sm:$0xf]
        %v616 = vld [vmem:[%s613 + $0x8] sm:$0xf]
        %v617 = vld [vmem:[%s613 + $0xc] sm:$0xf]
        %v618 = vld [vmem:[%s613 + $0x10] sm:$0xf]
        %v619 = vld [vmem:[%s613 + $0x14] sm:$0xf]
        %v620 = vld [vmem:[%s613 + $0x18] sm:$0xf]
        %v621 = vld [vmem:[%s613 + $0x1c] sm:$0xf]
        %v622 = vld [vmem:[%s613 + $0x20] sm:$0xf]
        %s623 = scalar_lea.vmem [#allocation5], 12
        %v624 = vld [vmem:[%s623] sm:$0xf]
        %v634 = vunpack.c.l.b16 %v614
        %v635 = vunpack.c.l.b16 %v615
        %v636 = vunpack.c.l.b16 %v616
        %v637 = vunpack.c.l.b16 %v617
        %v638 = vunpack.c.l.b16 %v618
        %v639 = vunpack.c.l.b16 %v619
        %v640 = vunpack.c.l.b16 %v620
        %v641 = vunpack.c.l.b16 %v621
        %v642 = vunpack.c.l.b16 %v622
        %v643 = vpack.c.b16 %v635, %v634
        %v644 = vpack.c.b16 %v637, %v636
        %v645 = vpack.c.b16 %v639, %v638
        %v646 = vpack.c.b16 %v641, %v640
        %v647 = vpack.c.b16 %v642, %v642
        %v649 = vsel %vm318, %v624, 0
        %v652 = vsel %vm318, %v643, 0
        %v655 = vsel %vm318, %v644, 0
        %v658 = vsel %vm318, %v645, 0
        %v661 = vsel %vm318, %v646, 0
        %v664 = vsel %vm318, %v647, 0
        %666 = vmatprep.subr.bf16.mxu0 0
        %667 = vmatpush1.bf16.xpose.msra.mxu0 %v652
        %668 = vmatprep.subr.bf16.mxu0 0
        %669 = vmatpush1.bf16.xpose.msra.mxu0 %v655
        %670 = vmatprep.subr.bf16.mxu0 0
        %671 = vmatpush1.bf16.xpose.msra.mxu0 %v658
        %672 = vmatprep.subr.bf16.mxu0 0
        %673 = vmatpush1.bf16.xpose.msra.mxu0 %v661
        %674 = vmatprep.subr.bf16.mxu0 0
        %675 = vmatpush1.bf16.xpose.msra.mxu0 %v664
        %676 = vmatprep.subr.bf16.mxu0 0
        %677 = vmatpush1.bf16.xpose.msra.mxu0 0
        %678 = vmatprep.subr.bf16.mxu0 0
        %679 = vmatpush1.bf16.xpose.msra.mxu0 0
        %680 = vmatprep.subr.bf16.mxu0 0
        %681 = vmatpush1.bf16.xpose.msra.mxu0 0
        %682 = vmatprep.subr.bf16.mxu0 0
        %683 = vmatpush1.bf16.xpose.msra.mxu0 0
        %684 = vmatprep.subr.bf16.mxu0 0
        %685 = vmatpush1.bf16.xpose.msra.mxu0 0
        %686 = vmatprep.subr.bf16.mxu0 0
        %687 = vmatpush1.bf16.xpose.msra.mxu0 0
        %688 = vmatprep.subr.bf16.mxu0 0
        %689 = vmatpush1.bf16.xpose.msra.mxu0 0
        %690 = vmatprep.subr.bf16.mxu0 0
        %691 = vmatpush1.bf16.xpose.msra.mxu0 0
        %692 = vmatprep.subr.bf16.mxu0 0
        %693 = vmatpush1.bf16.xpose.msra.mxu0 0
        %694 = vmatprep.subr.bf16.mxu0 0
        %695 = vmatpush1.bf16.xpose.msra.mxu0 0
        %696 = vmatprep.subr.bf16.mxu0 0
        %697 = vmatpush1.bf16.xpose.msra.mxu0 0
        %698 = vmatprep.mubr.bf16.mxu0 0
        %699 = vmatmul.mubr.bf16.gmra.mrb[0].mxu0 %v649
        %v700 = vpop.f32.mrb[0].mxu0
        %v701 = vadd.f32 0.0, %v700
        %v702 = vpop.f32.mrb[0].mxu0
        %v703 = vpop.f32.mrb[0].mxu0
        %v704 = vpop.f32.mrb[0].mxu0
        %705 = vdwg.mxu0
        %v706 = vld [vmem:[%s283] sm:$0xff]
        %v707 = vadd.f32 %v706, %v701
        %708 = vst.msk [vmem:[%s283] sm:$0xff] %vm377, %v707
        %s709 = scalar_lea.vmem %s247, 144 [#allocation2]
        %v710 = vld [vmem:[%s709] sm:$0xf]
        %v711 = vld [vmem:[%s709 + $0x4] sm:$0xf]
        %v712 = vld [vmem:[%s709 + $0x8] sm:$0xf]
        %v713 = vld [vmem:[%s709 + $0xc] sm:$0xf]
        %v714 = vld [vmem:[%s709 + $0x10] sm:$0xf]
        %v715 = vld [vmem:[%s709 + $0x14] sm:$0xf]
        %v716 = vld [vmem:[%s709 + $0x18] sm:$0xf]
        %v717 = vld [vmem:[%s709 + $0x1c] sm:$0xf]
        %v718 = vld [vmem:[%s709 + $0x20] sm:$0xf]
        %s719 = scalar_lea.vmem [#allocation5], 16
        %v720 = vld [vmem:[%s719] sm:$0xf]
        %v730 = vunpack.c.l.b16 %v710
        %v731 = vunpack.c.l.b16 %v711
        %v732 = vunpack.c.l.b16 %v712
        %v733 = vunpack.c.l.b16 %v713
        %v734 = vunpack.c.l.b16 %v714
        %v735 = vunpack.c.l.b16 %v715
        %v736 = vunpack.c.l.b16 %v716
        %v737 = vunpack.c.l.b16 %v717
        %v738 = vunpack.c.l.b16 %v718
        %v739 = vpack.c.b16 %v731, %v730
        %v740 = vpack.c.b16 %v733, %v732
        %v741 = vpack.c.b16 %v735, %v734
        %v742 = vpack.c.b16 %v737, %v736
        %v743 = vpack.c.b16 %v738, %v738
        %v745 = vsel %vm318, %v720, 0
        %v748 = vsel %vm318, %v739, 0
        %v751 = vsel %vm318, %v740, 0
        %v754 = vsel %vm318, %v741, 0
        %v757 = vsel %vm318, %v742, 0
        %v760 = vsel %vm318, %v743, 0
        %762 = vmatprep.subr.bf16.mxu0 0
        %763 = vmatpush1.bf16.xpose.msra.mxu0 %v748
        %764 = vmatprep.subr.bf16.mxu0 0
        %765 = vmatpush1.bf16.xpose.msra.mxu0 %v751
        %766 = vmatprep.subr.bf16.mxu0 0
        %767 = vmatpush1.bf16.xpose.msra.mxu0 %v754
        %768 = vmatprep.subr.bf16.mxu0 0
        %769 = vmatpush1.bf16.xpose.msra.mxu0 %v757
        %770 = vmatprep.subr.bf16.mxu0 0
        %771 = vmatpush1.bf16.xpose.msra.mxu0 %v760
        %772 = vmatprep.subr.bf16.mxu0 0
        %773 = vmatpush1.bf16.xpose.msra.mxu0 0
        %774 = vmatprep.subr.bf16.mxu0 0
        %775 = vmatpush1.bf16.xpose.msra.mxu0 0
        %776 = vmatprep.subr.bf16.mxu0 0
        %777 = vmatpush1.bf16.xpose.msra.mxu0 0
        %778 = vmatprep.subr.bf16.mxu0 0
        %779 = vmatpush1.bf16.xpose.msra.mxu0 0
        %780 = vmatprep.subr.bf16.mxu0 0
        %781 = vmatpush1.bf16.xpose.msra.mxu0 0
        %782 = vmatprep.subr.bf16.mxu0 0
        %783 = vmatpush1.bf16.xpose.msra.mxu0 0
        %784 = vmatprep.subr.bf16.mxu0 0
        %785 = vmatpush1.bf16.xpose.msra.mxu0 0
        %786 = vmatprep.subr.bf16.mxu0 0
        %787 = vmatpush1.bf16.xpose.msra.mxu0 0
        %788 = vmatprep.subr.bf16.mxu0 0
        %789 = vmatpush1.bf16.xpose.msra.mxu0 0
        %790 = vmatprep.subr.bf16.mxu0 0
        %791 = vmatpush1.bf16.xpose.msra.mxu0 0
        %792 = vmatprep.subr.bf16.mxu0 0
        %793 = vmatpush1.bf16.xpose.msra.mxu0 0
        %794 = vmatprep.mubr.bf16.mxu0 0
        %795 = vmatmul.mubr.bf16.gmra.mrb[0].mxu0 %v745
        %v796 = vpop.f32.mrb[0].mxu0
        %v797 = vadd.f32 0.0, %v796
        %v798 = vpop.f32.mrb[0].mxu0
        %v799 = vpop.f32.mrb[0].mxu0
        %v800 = vpop.f32.mrb[0].mxu0
        %801 = vdwg.mxu0
        %v802 = vld [vmem:[%s283] sm:$0xff]
        %v803 = vadd.f32 %v802, %v797
        %804 = vst.msk [vmem:[%s283] sm:$0xff] %vm377, %v803
        %v805 = vld [vmem:[%s613] sm:$0xf]
        %v806 = vld [vmem:[%s613 + $0x4] sm:$0xf]
        %v807 = vld [vmem:[%s613 + $0x8] sm:$0xf]
        %v808 = vld [vmem:[%s613 + $0xc] sm:$0xf]
        %v809 = vld [vmem:[%s613 + $0x10] sm:$0xf]
        %v810 = vld [vmem:[%s613 + $0x14] sm:$0xf]
        %v811 = vld [vmem:[%s613 + $0x18] sm:$0xf]
        %v812 = vld [vmem:[%s613 + $0x1c] sm:$0xf]
        %v813 = vld [vmem:[%s613 + $0x20] sm:$0xf]
        %v814 = vld [vmem:[%s613 + $0x24] sm:$0x1]
        %s815 = scalar_lea.vmem [#allocation5], 20
        %v816 = vld [vmem:[%s815] sm:$0xf]
        %v827 = vunpack.c.l.b16 %v805
        %v828 = vunpack.c.l.b16 %v806
        %v829 = vunpack.c.l.b16 %v807
        %v830 = vunpack.c.l.b16 %v808
        %v831 = vunpack.c.l.b16 %v809
        %v832 = vunpack.c.l.b16 %v810
        %v833 = vunpack.c.l.b16 %v811
        %v834 = vunpack.c.l.b16 %v812
        %v835 = vunpack.c.l.b16 %v813
        %v836 = vunpack.c.l.b16 %v814
        %v837 = vpack.c.b16 %v828, %v827
        %v838 = vpack.c.b16 %v830, %v829
        %v839 = vpack.c.b16 %v832, %v831
        %v840 = vpack.c.b16 %v834, %v833
        %v841 = vpack.c.b16 %v836, %v835
        %v843 = vshrl.u32 %v837, 16
        %v845 = vshll.u32 %v837, 16
        %v847 = vrot.slane %v845, 1
        %v848 = vor.u32 %v843, %v847
        %v850 = vshll.u32 %v838, 16
        %v852 = vrot.slane %v850, 1
        %v853 = vsel %vm512, %v848, %v852
        %v854 = vshrl.u32 %v838, 16
        %v856 = vor.u32 %v854, %v852
        %v858 = vshll.u32 %v839, 16
        %v860 = vrot.slane %v858, 1
        %v861 = vsel %vm512, %v856, %v860
        %v862 = vshrl.u32 %v839, 16
        %v864 = vor.u32 %v862, %v860
        %v866 = vshll.u32 %v840, 16
        %v868 = vrot.slane %v866, 1
        %v869 = vsel %vm512, %v864, %v868
        %v870 = vshrl.u32 %v840, 16
        %v872 = vor.u32 %v870, %v868
        %v874 = vshll.u32 %v841, 16
        %v876 = vrot.slane %v874, 1
        %v877 = vsel %vm512, %v872, %v876
        %v878 = vshrl.u32 %v841, 16
        %v880 = vor.u32 %v878, %v876
        %v882 = vsel %vm318, %v816, 0
        %v885 = vsel %vm318, %v853, 0
        %v888 = vsel %vm318, %v861, 0
        %v891 = vsel %vm318, %v869, 0
        %v894 = vsel %vm318, %v877, 0
        %v897 = vsel %vm318, %v880, 0
        %899 = vmatprep.subr.bf16.mxu0 0
        %900 = vmatpush1.bf16.xpose.msra.mxu0 %v885
        %901 = vmatprep.subr.bf16.mxu0 0
        %902 = vmatpush1.bf16.xpose.msra.mxu0 %v888
        %903 = vmatprep.subr.bf16.mxu0 0
        %904 = vmatpush1.bf16.xpose.msra.mxu0 %v891
        %905 = vmatprep.subr.bf16.mxu0 0
        %906 = vmatpush1.bf16.xpose.msra.mxu0 %v894
        %907 = vmatprep.subr.bf16.mxu0 0
        %908 = vmatpush1.bf16.xpose.msra.mxu0 %v897
        %909 = vmatprep.subr.bf16.mxu0 0
        %910 = vmatpush1.bf16.xpose.msra.mxu0 0
        %911 = vmatprep.subr.bf16.mxu0 0
        %912 = vmatpush1.bf16.xpose.msra.mxu0 0
        %913 = vmatprep.subr.bf16.mxu0 0
        %914 = vmatpush1.bf16.xpose.msra.mxu0 0
        %915 = vmatprep.subr.bf16.mxu0 0
        %916 = vmatpush1.bf16.xpose.msra.mxu0 0
        %917 = vmatprep.subr.bf16.mxu0 0
        %918 = vmatpush1.bf16.xpose.msra.mxu0 0
        %919 = vmatprep.subr.bf16.mxu0 0
        %920 = vmatpush1.bf16.xpose.msra.mxu0 0
        %921 = vmatprep.subr.bf16.mxu0 0
        %922 = vmatpush1.bf16.xpose.msra.mxu0 0
        %923 = vmatprep.subr.bf16.mxu0 0
        %924 = vmatpush1.bf16.xpose.msra.mxu0 0
        %925 = vmatprep.subr.bf16.mxu0 0
        %926 = vmatpush1.bf16.xpose.msra.mxu0 0
        %927 = vmatprep.subr.bf16.mxu0 0
        %928 = vmatpush1.bf16.xpose.msra.mxu0 0
        %929 = vmatprep.subr.bf16.mxu0 0
        %930 = vmatpush1.bf16.xpose.msra.mxu0 0
        %931 = vmatprep.mubr.bf16.mxu0 0
        %932 = vmatmul.mubr.bf16.gmra.mrb[0].mxu0 %v882
        %v933 = vpop.f32.mrb[0].mxu0
        %v934 = vadd.f32 0.0, %v933
        %v935 = vpop.f32.mrb[0].mxu0
        %v936 = vpop.f32.mrb[0].mxu0
        %v937 = vpop.f32.mrb[0].mxu0
        %938 = vdwg.mxu0
        %v939 = vld [vmem:[%s283] sm:$0xff]
        %v940 = vadd.f32 %v939, %v934
        %941 = vst.msk [vmem:[%s283] sm:$0xff] %vm377, %v940
        %v942 = vld [vmem:[%s247 + $0x4] sm:$0xf]
        %v943 = vld [vmem:[%s247 + $0x8] sm:$0xf]
        %v944 = vld [vmem:[%s247 + $0xc] sm:$0xf]
        %v945 = vld [vmem:[%s247 + $0x10] sm:$0xf]
        %v946 = vld [vmem:[%s247 + $0x14] sm:$0xf]
        %v947 = vld [vmem:[%s247 + $0x18] sm:$0xf]
        %v948 = vld [vmem:[%s247 + $0x1c] sm:$0xf]
        %v949 = vld [vmem:[%s247 + $0x20] sm:$0xf]
        %v950 = vld [vmem:[%s247 + $0x24] sm:$0xf]
        %v951 = vld [vmem:[%s247 + $0x28] sm:$0x1]
        %s952 = scalar_lea.vmem [#allocation5], 24
        %v953 = vld [vmem:[%s952] sm:$0xf]
        %v964 = vunpack.c.l.b16 %v942
        %v965 = vunpack.c.l.b16 %v943
        %v966 = vunpack.c.l.b16 %v944
        %v967 = vunpack.c.l.b16 %v945
        %v968 = vunpack.c.l.b16 %v946
        %v969 = vunpack.c.l.b16 %v947
        %v970 = vunpack.c.l.b16 %v948
        %v971 = vunpack.c.l.b16 %v949
        %v972 = vunpack.c.l.b16 %v950
        %v973 = vunpack.c.l.b16 %v951
        %v974 = vpack.c.b16 %v965, %v964
        %v975 = vpack.c.b16 %v967, %v966
        %v976 = vpack.c.b16 %v969, %v968
        %v977 = vpack.c.b16 %v971, %v970
        %v978 = vpack.c.b16 %v973, %v972
        %v980 = vshrl.u32 %v974, 16
        %v982 = vshll.u32 %v974, 16
        %v984 = vrot.slane %v982, 1
        %v985 = vor.u32 %v980, %v984
        %v987 = vshll.u32 %v975, 16
        %v989 = vrot.slane %v987, 1
        %v990 = vsel %vm512, %v985, %v989
        %v991 = vshrl.u32 %v975, 16
        %v993 = vor.u32 %v991, %v989
        %v995 = vshll.u32 %v976, 16
        %v997 = vrot.slane %v995, 1
        %v998 = vsel %vm512, %v993, %v997
        %v999 = vshrl.u32 %v976, 16
        %v1001 = vor.u32 %v999, %v997
        %v1003 = vshll.u32 %v977, 16
        %v1005 = vrot.slane %v1003, 1
        %v1006 = vsel %vm512, %v1001, %v1005
        %v1007 = vshrl.u32 %v977, 16
        %v1009 = vor.u32 %v1007, %v1005
        %v1011 = vshll.u32 %v978, 16
        %v1013 = vrot.slane %v1011, 1
        %v1014 = vsel %vm512, %v1009, %v1013
        %v1015 = vshrl.u32 %v978, 16
        %v1017 = vor.u32 %v1015, %v1013
        %v1019 = vsel %vm318, %v953, 0
        %v1022 = vsel %vm318, %v990, 0
        %v1025 = vsel %vm318, %v998, 0
        %v1028 = vsel %vm318, %v1006, 0
        %v1031 = vsel %vm318, %v1014, 0
        %v1034 = vsel %vm318, %v1017, 0
        %1036 = vmatprep.subr.bf16.mxu0 0
        %1037 = vmatpush1.bf16.xpose.msra.mxu0 %v1022
        %1038 = vmatprep.subr.bf16.mxu0 0
        %1039 = vmatpush1.bf16.xpose.msra.mxu0 %v1025
        %1040 = vmatprep.subr.bf16.mxu0 0
        %1041 = vmatpush1.bf16.xpose.msra.mxu0 %v1028
        %1042 = vmatprep.subr.bf16.mxu0 0
        %1043 = vmatpush1.bf16.xpose.msra.mxu0 %v1031
        %1044 = vmatprep.subr.bf16.mxu0 0
        %1045 = vmatpush1.bf16.xpose.msra.mxu0 %v1034
        %1046 = vmatprep.subr.bf16.mxu0 0
        %1047 = vmatpush1.bf16.xpose.msra.mxu0 0
        %1048 = vmatprep.subr.bf16.mxu0 0
        %1049 = vmatpush1.bf16.xpose.msra.mxu0 0
        %1050 = vmatprep.subr.bf16.mxu0 0
        %1051 = vmatpush1.bf16.xpose.msra.mxu0 0
        %1052 = vmatprep.subr.bf16.mxu0 0
        %1053 = vmatpush1.bf16.xpose.msra.mxu0 0
        %1054 = vmatprep.subr.bf16.mxu0 0
        %1055 = vmatpush1.bf16.xpose.msra.mxu0 0
        %1056 = vmatprep.subr.bf16.mxu0 0
        %1057 = vmatpush1.bf16.xpose.msra.mxu0 0
        %1058 = vmatprep.subr.bf16.mxu0 0
        %1059 = vmatpush1.bf16.xpose.msra.mxu0 0
        %1060 = vmatprep.subr.bf16.mxu0 0
        %1061 = vmatpush1.bf16.xpose.msra.mxu0 0
        %1062 = vmatprep.subr.bf16.mxu0 0
        %1063 = vmatpush1.bf16.xpose.msra.mxu0 0
        %1064 = vmatprep.subr.bf16.mxu0 0
        %1065 = vmatpush1.bf16.xpose.msra.mxu0 0
        %1066 = vmatprep.subr.bf16.mxu0 0
        %1067 = vmatpush1.bf16.xpose.msra.mxu0 0
        %1068 = vmatprep.mubr.bf16.mxu0 0
        %1069 = vmatmul.mubr.bf16.gmra.mrb[0].mxu0 %v1019
        %v1070 = vpop.f32.mrb[0].mxu0
        %v1071 = vadd.f32 0.0, %v1070
        %v1072 = vpop.f32.mrb[0].mxu0
        %v1073 = vpop.f32.mrb[0].mxu0
        %v1074 = vpop.f32.mrb[0].mxu0
        %1075 = vdwg.mxu0
        %v1076 = vld [vmem:[%s283] sm:$0xff]
        %v1077 = vadd.f32 %v1076, %v1071
        %1078 = vst.msk [vmem:[%s283] sm:$0xff] %vm377, %v1077
        %v1079 = vld [vmem:[%s379 + $0x4] sm:$0xf]
        %v1080 = vld [vmem:[%s379 + $0x8] sm:$0xf]
        %v1081 = vld [vmem:[%s379 + $0xc] sm:$0xf]
        %v1082 = vld [vmem:[%s379 + $0x10] sm:$0xf]
        %v1083 = vld [vmem:[%s379 + $0x14] sm:$0xf]
        %v1084 = vld [vmem:[%s379 + $0x18] sm:$0xf]
        %v1085 = vld [vmem:[%s379 + $0x1c] sm:$0xf]
        %v1086 = vld [vmem:[%s379 + $0x20] sm:$0xf]
        %v1087 = vld [vmem:[%s379 + $0x24] sm:$0xf]
        %v1088 = vld [vmem:[%s379 + $0x28] sm:$0x1]
        %s1089 = scalar_lea.vmem [#allocation5], 28
        %v1090 = vld [vmem:[%s1089] sm:$0xf]
        %v1101 = vunpack.c.l.b16 %v1079
        %v1102 = vunpack.c.l.b16 %v1080
        %v1103 = vunpack.c.l.b16 %v1081
        %v1104 = vunpack.c.l.b16 %v1082
        %v1105 = vunpack.c.l.b16 %v1083
        %v1106 = vunpack.c.l.b16 %v1084
        %v1107 = vunpack.c.l.b16 %v1085
        %v1108 = vunpack.c.l.b16 %v1086
        %v1109 = vunpack.c.l.b16 %v1087
        %v1110 = vunpack.c.l.b16 %v1088
        %v1111 = vpack.c.b16 %v1102, %v1101
        %v1112 = vpack.c.b16 %v1104, %v1103
        %v1113 = vpack.c.b16 %v1106, %v1105
        %v1114 = vpack.c.b16 %v1108, %v1107
        %v1115 = vpack.c.b16 %v1110, %v1109
        %v1117 = vshrl.u32 %v1111, 16
        %v1119 = vshll.u32 %v1111, 16
        %v1121 = vrot.slane %v1119, 1
        %v1122 = vor.u32 %v1117, %v1121
        %v1124 = vshll.u32 %v1112, 16
        %v1126 = vrot.slane %v1124, 1
        %v1127 = vsel %vm512, %v1122, %v1126
        %v1128 = vshrl.u32 %v1112, 16
        %v1130 = vor.u32 %v1128, %v1126
        %v1132 = vshll.u32 %v1113, 16
        %v1134 = vrot.slane %v1132, 1
        %v1135 = vsel %vm512, %v1130, %v1134
        %v1136 = vshrl.u32 %v1113, 16
        %v1138 = vor.u32 %v1136, %v1134
        %v1140 = vshll.u32 %v1114, 16
        %v1142 = vrot.slane %v1140, 1
        %v1143 = vsel %vm512, %v1138, %v1142
        %v1144 = vshrl.u32 %v1114, 16
        %v1146 = vor.u32 %v1144, %v1142
        %v1148 = vshll.u32 %v1115, 16
        %v1150 = vrot.slane %v1148, 1
        %v1151 = vsel %vm512, %v1146, %v1150
        %v1152 = vshrl.u32 %v1115, 16
        %v1154 = vor.u32 %v1152, %v1150
        %v1156 = vsel %vm318, %v1090, 0
        %v1159 = vsel %vm318, %v1127, 0
        %v1162 = vsel %vm318, %v1135, 0
        %v1165 = vsel %vm318, %v1143, 0
        %v1168 = vsel %vm318, %v1151, 0
        %v1171 = vsel %vm318, %v1154, 0
        %1173 = vmatprep.subr.bf16.mxu0 0
        %1174 = vmatpush1.bf16.xpose.msra.mxu0 %v1159
        %1175 = vmatprep.subr.bf16.mxu0 0
        %1176 = vmatpush1.bf16.xpose.msra.mxu0 %v1162
        %1177 = vmatprep.subr.bf16.mxu0 0
        %1178 = vmatpush1.bf16.xpose.msra.mxu0 %v1165
        %1179 = vmatprep.subr.bf16.mxu0 0
        %1180 = vmatpush1.bf16.xpose.msra.mxu0 %v1168
        %1181 = vmatprep.subr.bf16.mxu0 0
        %1182 = vmatpush1.bf16.xpose.msra.mxu0 %v1171
        %1183 = vmatprep.subr.bf16.mxu0 0
        %1184 = vmatpush1.bf16.xpose.msra.mxu0 0
        %1185 = vmatprep.subr.bf16.mxu0 0
        %1186 = vmatpush1.bf16.xpose.msra.mxu0 0
        %1187 = vmatprep.subr.bf16.mxu0 0
        %1188 = vmatpush1.bf16.xpose.msra.mxu0 0
        %1189 = vmatprep.subr.bf16.mxu0 0
        %1190 = vmatpush1.bf16.xpose.msra.mxu0 0
        %1191 = vmatprep.subr.bf16.mxu0 0
        %1192 = vmatpush1.bf16.xpose.msra.mxu0 0
        %1193 = vmatprep.subr.bf16.mxu0 0
        %1194 = vmatpush1.bf16.xpose.msra.mxu0 0
        %1195 = vmatprep.subr.bf16.mxu0 0
        %1196 = vmatpush1.bf16.xpose.msra.mxu0 0
        %1197 = vmatprep.subr.bf16.mxu0 0
        %1198 = vmatpush1.bf16.xpose.msra.mxu0 0
        %1199 = vmatprep.subr.bf16.mxu0 0
        %1200 = vmatpush1.bf16.xpose.msra.mxu0 0
        %1201 = vmatprep.subr.bf16.mxu0 0
        %1202 = vmatpush1.bf16.xpose.msra.mxu0 0
        %1203 = vmatprep.subr.bf16.mxu0 0
        %1204 = vmatpush1.bf16.xpose.msra.mxu0 0
        %1205 = vmatprep.mubr.bf16.mxu0 0
        %1206 = vmatmul.mubr.bf16.gmra.mrb[0].mxu0 %v1156
        %v1207 = vpop.f32.mrb[0].mxu0
        %v1208 = vadd.f32 0.0, %v1207
        %v1209 = vpop.f32.mrb[0].mxu0
        %v1210 = vpop.f32.mrb[0].mxu0
        %v1211 = vpop.f32.mrb[0].mxu0
        %1212 = vdwg.mxu0
        %v1213 = vld [vmem:[%s283] sm:$0xff]
        %v1214 = vadd.f32 %v1213, %v1208
        %1215 = vst.msk [vmem:[%s283] sm:$0xff] %vm377, %v1214
        %v1216 = vld [vmem:[%s247 + $0x4] sm:$0xe]
        %v1217 = vld [vmem:[%s247 + $0x8] sm:$0xf]
        %v1218 = vld [vmem:[%s247 + $0xc] sm:$0xf]
        %v1219 = vld [vmem:[%s247 + $0x10] sm:$0xf]
        %v1220 = vld [vmem:[%s247 + $0x14] sm:$0xf]
        %v1221 = vld [vmem:[%s247 + $0x18] sm:$0xf]
        %v1222 = vld [vmem:[%s247 + $0x1c] sm:$0xf]
        %v1223 = vld [vmem:[%s247 + $0x20] sm:$0xf]
        %v1224 = vld [vmem:[%s247 + $0x24] sm:$0xf]
        %v1225 = vld [vmem:[%s247 + $0x28] sm:$0x1]
        %s1226 = scalar_lea.vmem [#allocation5], 32
        %v1227 = vld [vmem:[%s1226] sm:$0xf]
        %v1238 = vunpack.c.l.b16 %v1216
        %v1239 = vunpack.c.l.b16 %v1217
        %v1240 = vunpack.c.l.b16 %v1218
        %v1241 = vunpack.c.l.b16 %v1219
        %v1242 = vunpack.c.l.b16 %v1220
        %v1243 = vunpack.c.l.b16 %v1221
        %v1244 = vunpack.c.l.b16 %v1222
        %v1245 = vunpack.c.l.b16 %v1223
        %v1246 = vunpack.c.l.b16 %v1224
        %v1247 = vunpack.c.l.b16 %v1225
        %v1248 = vpack.c.b16 %v1239, %v1238
        %v1249 = vpack.c.b16 %v1241, %v1240
        %v1250 = vpack.c.b16 %v1243, %v1242
        %v1251 = vpack.c.b16 %v1245, %v1244
        %v1252 = vpack.c.b16 %v1247, %v1246
        %vm1253 = vcmask 1046528
        %v1254 = vrot.slane %v1248, 1
        %v1255 = vrot.slane %v1249, 1
        %v1256 = vsel %vm1253, %v1254, %v1255
        %v1257 = vrot.slane %v1250, 1
        %v1258 = vsel %vm1253, %v1255, %v1257
        %v1259 = vrot.slane %v1251, 1
        %v1260 = vsel %vm1253, %v1257, %v1259
        %v1261 = vrot.slane %v1252, 1
        %v1262 = vsel %vm1253, %v1259, %v1261
        %v1264 = vsel %vm318, %v1227, 0
        %v1267 = vsel %vm318, %v1256, 0
        %v1270 = vsel %vm318, %v1258, 0
        %v1273 = vsel %vm318, %v1260, 0
        %v1276 = vsel %vm318, %v1262, 0
        %v1279 = vsel %vm318, %v1261, 0
        %1281 = vmatprep.subr.bf16.mxu0 0
        %1282 = vmatpush1.bf16.xpose.msra.mxu0 %v1267
        %1283 = vmatprep.subr.bf16.mxu0 0
        %1284 = vmatpush1.bf16.xpose.msra.mxu0 %v1270
        %1285 = vmatprep.subr.bf16.mxu0 0
        %1286 = vmatpush1.bf16.xpose.msra.mxu0 %v1273
        %1287 = vmatprep.subr.bf16.mxu0 0
        %1288 = vmatpush1.bf16.xpose.msra.mxu0 %v1276
        %1289 = vmatprep.subr.bf16.mxu0 0
        %1290 = vmatpush1.bf16.xpose.msra.mxu0 %v1279
        %1291 = vmatprep.subr.bf16.mxu0 0
        %1292 = vmatpush1.bf16.xpose.msra.mxu0 0
        %1293 = vmatprep.subr.bf16.mxu0 0
        %1294 = vmatpush1.bf16.xpose.msra.mxu0 0
        %1295 = vmatprep.subr.bf16.mxu0 0
        %1296 = vmatpush1.bf16.xpose.msra.mxu0 0
        %1297 = vmatprep.subr.bf16.mxu0 0
        %1298 = vmatpush1.bf16.xpose.msra.mxu0 0
        %1299 = vmatprep.subr.bf16.mxu0 0
        %1300 = vmatpush1.bf16.xpose.msra.mxu0 0
        %1301 = vmatprep.subr.bf16.mxu0 0
        %1302 = vmatpush1.bf16.xpose.msra.mxu0 0
        %1303 = vmatprep.subr.bf16.mxu0 0
        %1304 = vmatpush1.bf16.xpose.msra.mxu0 0
        %1305 = vmatprep.subr.bf16.mxu0 0
        %1306 = vmatpush1.bf16.xpose.msra.mxu0 0
        %1307 = vmatprep.subr.bf16.mxu0 0
        %1308 = vmatpush1.bf16.xpose.msra.mxu0 0
        %1309 = vmatprep.subr.bf16.mxu0 0
        %1310 = vmatpush1.bf16.xpose.msra.mxu0 0
        %1311 = vmatprep.subr.bf16.mxu0 0
        %1312 = vmatpush1.bf16.xpose.msra.mxu0 0
        %1313 = vmatprep.mubr.bf16.mxu0 0
        %1314 = vmatmul.mubr.bf16.gmra.mrb[0].mxu0 %v1264
        %v1315 = vpop.f32.mrb[0].mxu0
        %v1316 = vadd.f32 0.0, %v1315
        %v1317 = vpop.f32.mrb[0].mxu0
        %v1318 = vpop.f32.mrb[0].mxu0
        %v1319 = vpop.f32.mrb[0].mxu0
        %1320 = vdwg.mxu0
        %v1321 = vld [vmem:[%s283] sm:$0xff]
        %v1322 = vadd.f32 %v1321, %v1316
        %1323 = vst.msk [vmem:[%s283] sm:$0xff] %vm377, %v1322
        %v1324 = vld [vmem:[%s283] sm:$0xff]
        %v1325 = vld [vmem:[#allocation7] sm:$0xff]
        %1327 = vset.pattern.permute.xlu0 0
        %1328 = vperm.xlu0 %1327, %v1325
        %v1329 = vpop.permute.xlu0 %1328
        %v1331 = vadd.f32 %v1324, %v1329
        %v1332 = vld [vmem:[#allocation8] sm:$0x1]
        %v1334 = vlaneseq
        %v1335 = vshrl.u32 %v1334, 7
        %v1336 = vsub.s32 0, %v1335
        %v1337 = vrot.slane %v1332, %v1336
        %v1339 = vmul.f32 %v1331, %v1337
        %v1340 = vsel %vm377, %v1339, 0.0
        %1341 = vadd.xlane.f32.xlu0 %v1340
        %v1342 = vpop.xlane.xlu0 %1341
        %v1343 = vmul.f32 %v1331, %v1331
        %v1344 = vmul.f32 %v1343, %v1337
        %v1345 = vsel %vm377, %v1344, 0.0
        %1346 = vadd.xlane.f32.xlu0 %v1345
        %v1347 = vpop.xlane.xlu0 %1346
        %v1348 = vmul.f32 %v1342, 0.015625
        %v1349 = vmul.f32 %v1347, 0.015625
        %v1350 = vmul.f32 %v1348, %v1348
        %v1351 = vsub.f32 %v1349, %v1350
        %v1352 = vmax.f32 %v1351, 0.0
        %v1353 = vsub.f32 %v1331, %v1348
        %v1354 = vadd.f32 %v1352, 1e-05
        %v1355 = vrsqrt.pop %v1354
        %v1356 = vmul.f32 %v1353, %v1355
        %v1357 = vmax.f32 %v1356, 0.0
        %1358 = vst.msk [vmem:[%s283] sm:$0xff] %vm377, %v1357
        %s1359 = sand.u32 %s144, 1
        %s1360 = scalar_lea.sflag [#allocation4], %s1359
        %s1361 = sand.u32 %s144, 1
        %s1362 = smul.addr %s1361, 8
        %s1363 = scalar_lea.vmem [#allocation10], %s1362
        // Predicated region
        $region53: #{contracting_block_gen.1} parent=35 // pred_check
          %p1364 = pneg %p154
        $region54: #{contracting_block_gen.1} parent=35 // pred_check_branch
          %1366 = sbr.rel (%p1364) target = $region56
        $region55: #{contracting_block_gen.1} parent=35 // pred_region
          %s1368 = ssub.s32 128, 128
          %1369 = vsyncadd %s1360, %s1368
          %s1370 = sadd.s32 %s28, %s27
          %s1371 = smul.addr %s1370, 128
          %s1372 = scalar_lea.hbm %s4, %s1371
          %s1374 = sshll.u32 %s1363, 4
          %s1375 = int_to_ptr.vmem [resolvable:$true] %s1374
          %1377 = dma.vmem_to_hbm [thread:$0]  %s1375, 128, %s1372, %s1360
        $region56: #{contracting_block_gen.1} parent=35 // pred_fallthru
          _
      $region36: #{contracting_block_gen.1} parent=5 // pred_fallthru
        _
      %p1378 = scmp.le.s32.totalorder 2, %s18
      // Predicated region
      $region57: #{contracting_block_gen.1} parent=5 // pred_check
        %p1379 = pneg %p1378
      $region58: #{contracting_block_gen.1} parent=5 // pred_check_branch
        %1381 = sbr.rel (%p1379) target = $region60
      $region59: #{contracting_block_gen.1} parent=5 // pred_region
        %s1382 = ssub.s32 %s18, 2
        // Predicated region
        $region61: #{contracting_block_gen.1} parent=59 // pred_check
          %p1383 = pneg %p160
        $region62: #{contracting_block_gen.1} parent=59 // pred_check_branch
          %1385 = sbr.rel (%p1383) target = $region64
        $region63: #{contracting_block_gen.1} parent=59 // pred_region
          %s1386 = sand.u32 %s145, 1
          %s1387 = scalar_lea.sflag [#allocation4], %s1386
          %s1388 = sand.u32 %s145, 1
          %s1389 = smul.addr %s1388, 8
          %s1390 = scalar_lea.vmem [#allocation10], %s1389
          %1391 = dma.done %s1387, 128
        $region64: #{contracting_block_gen.1} parent=59 // pred_fallthru
          _
      $region60: #{contracting_block_gen.1} parent=5 // pred_fallthru
        _
    $region6: #{contracting_block_gen.1} parent=1 // loop_footer
      %s22 = sadd.s32 1, %s18
    $region7: #{contracting_block_gen.1} parent=1 // loop_footer_branch
      %17 = sbr.rel target = $region3
    $region8: #{contracting_block_gen.1} parent=1 // loop_exit
      _
    %1392 = vsyncpa [#allocation3], 1
    %s1393 = scalar_lea.sflag [#allocation3], 1
    %1394 = vsyncpa %s1393, 1
    %1395 = vsyncpa [#allocation6], 1
    %1396 = vsyncpa [#allocation9], 1
    %1397 = vsyncpa [#allocation4], 1
    %s1398 = scalar_lea.sflag [#allocation4], 1
    %1399 = vsyncpa %s1398, 1

</llo_original>
